<compile_context>
chip_gen: v6e
topology: v6e:2x2x1
jax: 0.10.0
libtpu: 0.0.40
codegen_flags: <defaults>
</compile_context>

<pallas_src>
import jax
import jax.numpy as jnp
from jax import lax
from jax.experimental import pallas as pl
from jax.experimental.pallas import tpu as pltpu

TEXT_DIM = 768
IMG_DIM = 2048
FUSED_DIM = TEXT_DIM + IMG_DIM


def _round_up(x, m):
    return ((x + m - 1) // m) * m


def _tile_config(B):
    """Generation-aware (max batch tile, scoped-VMEM limit)."""
    try:
        kind = jax.devices()[0].device_kind.lower()
    except Exception:
        kind = ""
    if "v5" in kind:
        # ~0.82 TB/s HBM: per-step DMA already dwarfs the ~0.35us step
        # overhead; modest tile, raise the 16 MiB default scoped limit.
        max_tb, vmem_limit = 32, 64 << 20
    elif "v6" in kind:
        # 128 MiB physical VMEM: large tiles amortize per-step overhead and
        # give longer, more efficient DMAs.
        max_tb, vmem_limit = 64, 96 << 20
    else:
        # v7x (64 MiB physical VMEM per TC) or unknown generation: keep the
        # tile conservative AND keep >= 2 grid steps when B > 8 so the
        # "parallel" batch axis actually shards across both TensorCores.
        max_tb, vmem_limit = 32, 48 << 20
        if B > 8:
            max_tb = min(max_tb, _round_up(pl.cdiv(B, 2), 8))
    return max_tb, vmem_limit


def fusion_kernel(text_ref, img_ref, wt_ref, wi_ref, b_ref, out_ref):
    # Inputs may be bf16 (producer-native); cast to f32 right after load
    # (v5e has no bf16 VALU/EUP; also keeps the region mean stable).
    text = text_ref[...].astype(jnp.float32)                  # [TB, 768]
    img = img_ref[...].astype(jnp.float32)                    # [TB, R, 2048]

    # Mean-pool image regions (R is the full block; no padded regions leak in).
    pooled = jnp.mean(img, axis=1)                            # [TB, 2048]

    # relu(concat([a, b])) == concat([relu(a), relu(b)]) (elementwise).
    text = jnp.maximum(text, 0.0)
    pooled = jnp.maximum(pooled, 0.0)

    # Dropout(p=0.1) in eval mode is identity.
    # TODO(synk): training-mode stochastic dropout (pltpu PRNG mask) not implemented.

    # x @ W.T as two dot_generals contracting the last dims against the
    # pre-split native-layout weight halves -- no in-VMEM lane concatenation.
    dn = (((1,), (1,)), ((), ()))
    logits = (
        lax.dot_general(text, wt_ref[...].astype(jnp.float32), dn,
                        preferred_element_type=jnp.float32)
        + lax.dot_general(pooled, wi_ref[...].astype(jnp.float32), dn,
                          preferred_element_type=jnp.float32)
        + b_ref[...].astype(jnp.float32)                       # [1, C] broadcast
    )
    out_ref[...] = logits.astype(out_ref.dtype)


def multi_att_fusion(text_features, image_features, weight, bias,
                     max_batch_tile=None):
    """weight: [num_classes, 2816] (native PyTorch layout), bias: [num_classes]."""
    B, _, _ = text_features.shape
    _, R, _ = image_features.shape
    C = weight.shape[0]

    # CLS slice done in the wrapper: only [B, 768] of text enters the kernel.
    text_cls = text_features[:, 0, :]
    # Pre-split weight halves (lane-aligned 768 = 6*128 boundary) and 2-D bias.
    w_text = weight[:, :TEXT_DIM]
    w_img = weight[:, TEXT_DIM:]
    b2 = bias.reshape(1, C)

    max_tb, vmem_limit = _tile_config(B)
    if max_batch_tile is not None:
        max_tb = max_batch_tile

    # TB == B (single full block) or a multiple of 8 so the (TB, C) output
    # block satisfies the (8,128) rule; partial final blocks are padded on
    # read and masked on write, and batch rows are independent.
    TB = B if B <= max_tb else max_tb
    grid_b = pl.cdiv(B, TB)

    return pl.pallas_call(
        fusion_kernel,
        out_shape=jax.ShapeDtypeStruct((B, C), jnp.float32),
        grid=(grid_b,),
        in_specs=[
            pl.BlockSpec((TB, TEXT_DIM), lambda i: (i, 0)),
            pl.BlockSpec((TB, R, IMG_DIM), lambda i: (i, 0, 0)),
            # Weights / bias resident across the batch grid (constant index).
            pl.BlockSpec((C, TEXT_DIM), lambda i: (0, 0)),
            pl.BlockSpec((C, IMG_DIM), lambda i: (0, 0)),
            pl.BlockSpec((1, C), lambda i: (0, 0)),
        ],
        out_specs=pl.BlockSpec((TB, C), lambda i: (i, 0)),
        compiler_params=pltpu.CompilerParams(
            dimension_semantics=("parallel",),  # batch rows independent
            vmem_limit_bytes=vmem_limit,
        ),
    )(text_cls, image_features, w_text, w_img, b2)


def reference(text_features, image_features, weight, bias):
    text_cls = text_features[:, 0, :].astype(jnp.float32)
    image_pooled = jnp.mean(image_features.astype(jnp.float32), axis=1)
    fused = jnp.concatenate([text_cls, image_pooled], axis=-1)
    fused = jnp.maximum(fused, 0.0)
    return fused @ weight.T.astype(jnp.float32) + bias.astype(jnp.float32)


if __name__ == "__main__":
    key = jax.random.PRNGKey(0)
    k_text, k_img, k_w, k_b = jax.random.split(key, 4)

    B = 2            # batch
    S = 8            # seq_len (only CLS token used)
    R = 49           # image regions (7x7 CNN grid)
    NUM_CLASSES = 8  # opt.num_classes

    # Producer-native bf16 activations (halves the dominant HBM stream).
    text_features = jax.random.normal(
        k_text, (B, S, TEXT_DIM), dtype=jnp.float32).astype(jnp.bfloat16)
    image_features = jax.random.normal(
        k_img, (B, R, IMG_DIM), dtype=jnp.float32).astype(jnp.bfloat16)

    # Deterministic nn.Linear-style init: U(-k, k), k = 1/sqrt(in_features),
    # native PyTorch [out_features, in_features] layout, f32 params.
    bound = 1.0 / jnp.sqrt(jnp.float32(FUSED_DIM))
    weight = jax.random.uniform(
        k_w, (NUM_CLASSES, FUSED_DIM), minval=-bound, maxval=bound,
        dtype=jnp.float32)
    bias = jax.random.uniform(
        k_b, (NUM_CLASSES,), minval=-bound, maxval=bound, dtype=jnp.float32)

    # Primary run (B=2: single full block).
    out = multi_att_fusion(text_features, image_features, weight, bias)
    out = jax.block_until_ready(out)
    ref = reference(text_features, image_features, weight, bias)
    assert out.shape == (B, NUM_CLASSES)
    assert jnp.allclose(out, ref, atol=1e-2, rtol=1e-2), "mismatch vs reference (B=2)"

    # Secondary check: B not divisible by the tile and B > tile, forcing a
    # multi-step grid with a partial (padded/masked) final block.
    B2 = 20
    k2_text, k2_img = jax.random.split(jax.random.PRNGKey(1), 2)
    text2 = jax.random.normal(
        k2_text, (B2, S, TEXT_DIM), dtype=jnp.float32).astype(jnp.bfloat16)
    img2 = jax.random.normal(
        k2_img, (B2, R, IMG_DIM), dtype=jnp.float32).astype(jnp.bfloat16)
    out2 = multi_att_fusion(text2, img2, weight, bias, max_batch_tile=8)
    out2 = jax.block_until_ready(out2)
    ref2 = reference(text2, img2, weight, bias)
    assert out2.shape == (B2, NUM_CLASSES)
    assert jnp.allclose(out2, ref2, atol=1e-2, rtol=1e-2), "mismatch vs reference (B=20)"

    print("KERNEL_OK")
</pallas_src>

<mosaic_0001>
module attributes {stable_mosaic.version = 11 : i64} {
  func.func @fusion_kernel(%arg0: i32, %arg1: memref<2x768xbf16, #tpu.memory_space<vmem>>, %arg2: memref<2x49x2048xbf16, #tpu.memory_space<vmem>>, %arg3: memref<8x768xf32, #tpu.memory_space<vmem>>, %arg4: memref<8x2048xf32, #tpu.memory_space<vmem>>, %arg5: memref<1x8xf32, #tpu.memory_space<vmem>>, %arg6: memref<2x8xf32, #tpu.memory_space<vmem>>) attributes {dimension_semantics = [#tpu.dimension_semantics<parallel>], iteration_bounds = array<i64: 1>, scalar_prefetch = 0 : i64, scratch_operands = 0 : i64, tpu.core_type = #tpu.core_type<tc>, window_params = [{transform_indices = @transform_0, window_bounds = array<i64: 2, 768>}, {transform_indices = @transform_1, window_bounds = array<i64: 2, 49, 2048>}, {pipeline_mode = #tpu.pipeline_mode<synchronous>, transform_indices = @transform_2, window_bounds = array<i64: 8, 768>}, {pipeline_mode = #tpu.pipeline_mode<synchronous>, transform_indices = @transform_3, window_bounds = array<i64: 8, 2048>}, {pipeline_mode = #tpu.pipeline_mode<synchronous>, transform_indices = @transform_4, window_bounds = array<i64: 1, 8>}, {transform_indices = @transform_5, window_bounds = array<i64: 2, 8>}]} {
    %c0 = arith.constant 0 : index
    %c0_0 = arith.constant 0 : index
    %0 = vector.load %arg1[%c0, %c0_0] : memref<2x768xbf16, #tpu.memory_space<vmem>>, vector<2x768xbf16>
    %1 = arith.extf %0 : vector<2x768xbf16> to vector<2x768xf32>
    %c0_1 = arith.constant 0 : index
    %c0_2 = arith.constant 0 : index
    %c0_3 = arith.constant 0 : index
    %2 = vector.load %arg2[%c0_1, %c0_2, %c0_3] : memref<2x49x2048xbf16, #tpu.memory_space<vmem>>, vector<2x49x2048xbf16>
    %3 = arith.extf %2 : vector<2x49x2048xbf16> to vector<2x49x2048xf32>
    %cst = arith.constant dense<0.000000e+00> : vector<2x2048xf32>
    %4 = vector.multi_reduction <add>, %3, %cst [1] : vector<2x49x2048xf32> to vector<2x2048xf32>
    %cst_4 = arith.constant 4.900000e+01 : f32
    %5 = vector.broadcast %cst_4 : f32 to vector<2x2048xf32>
    %6 = arith.divf %4, %5 : vector<2x2048xf32>
    %cst_5 = arith.constant 0.000000e+00 : f32
    %7 = vector.broadcast %cst_5 : f32 to vector<2x768xf32>
    %8 = arith.maximumf %1, %7 : vector<2x768xf32>
    %cst_6 = arith.constant 0.000000e+00 : f32
    %9 = vector.broadcast %cst_6 : f32 to vector<2x2048xf32>
    %10 = arith.maximumf %6, %9 : vector<2x2048xf32>
    %c0_7 = arith.constant 0 : index
    %c0_8 = arith.constant 0 : index
    %11 = vector.load %arg3[%c0_7, %c0_8] : memref<8x768xf32, #tpu.memory_space<vmem>>, vector<8x768xf32>
    %cst_9 = arith.constant dense<0.000000e+00> : vector<2x8xf32>
    %12 = tpu.matmul %8, %11, %cst_9 {dimension_numbers = #tpu.dot_dimension_numbers<[1], [1], [0], [0], [0, 0, 1, 0], [], []>} : vector<2x768xf32>, vector<8x768xf32>, vector<2x8xf32> -> vector<2x8xf32>
    %c0_10 = arith.constant 0 : index
    %c0_11 = arith.constant 0 : index
    %13 = vector.load %arg4[%c0_10, %c0_11] : memref<8x2048xf32, #tpu.memory_space<vmem>>, vector<8x2048xf32>
    %cst_12 = arith.constant dense<0.000000e+00> : vector<2x8xf32>
    %14 = tpu.matmul %10, %13, %cst_12 {dimension_numbers = #tpu.dot_dimension_numbers<[1], [1], [0], [0], [0, 0, 1, 0], [], []>} : vector<2x2048xf32>, vector<8x2048xf32>, vector<2x8xf32> -> vector<2x8xf32>
    %15 = arith.addf %12, %14 : vector<2x8xf32>
    %c0_13 = arith.constant 0 : index
    %c0_14 = arith.constant 0 : index
    %16 = vector.load %arg5[%c0_13, %c0_14] : memref<1x8xf32, #tpu.memory_space<vmem>>, vector<1x8xf32>
    %17 = vector.broadcast %16 : vector<1x8xf32> to vector<2x8xf32>
    %18 = arith.addf %15, %17 : vector<2x8xf32>
    %c0_15 = arith.constant 0 : index
    %c0_16 = arith.constant 0 : index
    %19 = vector.load %arg6[%c0_15, %c0_16] : memref<2x8xf32, #tpu.memory_space<vmem>>, vector<2x8xf32>
    tpu.vector_store %arg6[%c0_15, %c0_16], %18 {strides = array<i32>} : memref<2x8xf32, #tpu.memory_space<vmem>>, vector<2x8xf32>,
    return
  }
  func.func @transform_0(%arg0: i32) -> (i32, i32) {
    %c0_i32 = arith.constant 0 : i32
    %c0_i32_0 = arith.constant 0 : i32
    return %arg0, %c0_i32 : i32, i32
  }
  func.func @transform_1(%arg0: i32) -> (i32, i32, i32) {
    %c0_i32 = arith.constant 0 : i32
    %c0_i32_0 = arith.constant 0 : i32
    %c0_i32_1 = arith.constant 0 : i32
    return %arg0, %c0_i32, %c0_i32_0 : i32, i32, i32
  }
  func.func @transform_2(%arg0: i32) -> (i32, i32) {
    %c0_i32 = arith.constant 0 : i32
    %c0_i32_0 = arith.constant 0 : i32
    %c0_i32_1 = arith.constant 0 : i32
    return %c0_i32, %c0_i32_0 : i32, i32
  }
  func.func @transform_3(%arg0: i32) -> (i32, i32) {
    %c0_i32 = arith.constant 0 : i32
    %c0_i32_0 = arith.constant 0 : i32
    %c0_i32_1 = arith.constant 0 : i32
    return %c0_i32, %c0_i32_0 : i32, i32
  }
  func.func @transform_4(%arg0: i32) -> (i32, i32) {
    %c0_i32 = arith.constant 0 : i32
    %c0_i32_0 = arith.constant 0 : i32
    %c0_i32_1 = arith.constant 0 : i32
    return %c0_i32, %c0_i32_0 : i32, i32
  }
  func.func @transform_5(%arg0: i32) -> (i32, i32) {
    %c0_i32 = arith.constant 0 : i32
    %c0_i32_0 = arith.constant 0 : i32
    return %arg0, %c0_i32 : i32, i32
  }
}

</mosaic_0001>

<llo_original>
// kernel: tpu_custom_call.1
$region0: #{tpu_custom_call.1}
  #allocation0 [shape = 'u32[]', space=smem, size = 0x4, offset = 0x4, fixed_abs, tag = 'smem constant byte address 0x4 - core index']
  #allocation1 [shape = 'u32[144,128]{1,0:T(1,128)}', space=vmem, size = 0x12000, scoped, tag = 'internal scratch']
  %s0 = inlined_call_operand.vmem [shape: bf16[2,768], index: 0, kind: input, shape index: {}]
  %s1 = inlined_call_operand.vmem [shape: bf16[2,49,2048], index: 1, kind: input, shape index: {}]
  %s2 = inlined_call_operand.vmem [shape: f32[8,768], index: 2, kind: input, shape index: {}]
  %s3 = inlined_call_operand.vmem [shape: f32[8,2048], index: 3, kind: input, shape index: {}]
  %s4 = inlined_call_operand.vmem [shape: f32[1,8], index: 4, kind: input, shape index: {}]
  %s5 = inlined_call_operand.hbm [shape: f32[2,8], index: 5, kind: output, shape index: {}]
  %s6 = sld [smem:[#allocation0]]
  $region30: #{tpu_custom_call.1} parent=0
    _
  %s8 = ssub.s32 1, %s6
  %s9 = scalar_select 0, %s8, %s6
  $region1: #{tpu_custom_call.1} parent=0
    #allocation2 [shape = 'u8[1024]{0}', space=vmem, size = 0x400, scoped, tag = 'output window, operand 0, single buffered']
    #allocation3 [shape = 's32[1]{0}', space=sflag, size = 0x4, scoped, tag = 'scoped memory for tpu_custom_call.1']
    %10 = vsyncpa [#allocation3], 0
    // Predicated region
    $region2: #{tpu_custom_call.1} parent=1 // pred_check
      _
    $region3: #{tpu_custom_call.1} parent=1 // pred_check_branch
      %12 = sbr.rel (0) target = $region5
    $region4: #{tpu_custom_call.1} parent=1 // pred_region
      _
    $region5: #{tpu_custom_call.1} parent=1 // pred_fallthru
      _
    // Predicated region
    $region6: #{tpu_custom_call.1} parent=1 // pred_check
      _
    $region7: #{tpu_custom_call.1} parent=1 // pred_check_branch
      %14 = sbr.rel (0) target = $region9
    $region8: #{tpu_custom_call.1} parent=1 // pred_region
      _
    $region9: #{tpu_custom_call.1} parent=1 // pred_fallthru
      _
    // Predicated region
    $region10: #{tpu_custom_call.1} parent=1 // pred_check
      _
    $region11: #{tpu_custom_call.1} parent=1 // pred_check_branch
      %16 = sbr.rel (0) target = $region13
    $region12: #{tpu_custom_call.1} parent=1 // pred_region
      _
    $region13: #{tpu_custom_call.1} parent=1 // pred_fallthru
      _
    // Predicated region
    $region14: #{tpu_custom_call.1} parent=1 // pred_check
      _
    $region15: #{tpu_custom_call.1} parent=1 // pred_check_branch
      %18 = sbr.rel (0) target = $region17
    $region16: #{tpu_custom_call.1} parent=1 // pred_region
      _
    $region17: #{tpu_custom_call.1} parent=1 // pred_fallthru
      _
    // Predicated region
    $region18: #{tpu_custom_call.1} parent=1 // pred_check
      _
    $region19: #{tpu_custom_call.1} parent=1 // pred_check_branch
      %20 = sbr.rel (0) target = $region21
    $region20: #{tpu_custom_call.1} parent=1 // pred_region
      _
    $region21: #{tpu_custom_call.1} parent=1 // pred_fallthru
      _
    %v21 = vld [vmem:[%s0] sm:$0x3f]
    %v22 = vunpack.c.l.bf16 %v21
    %v23 = vunpack.c.h.bf16 %v21
    %v24 = vld [vmem:[%s1] sm:$0xff]
    %v25 = vld [vmem:[%s1 + $0x8] sm:$0xff]
    %v26 = vld [vmem:[%s1 + $0x10] sm:$0xff]
    %v27 = vld [vmem:[%s1 + $0x18] sm:$0xff]
    %v28 = vld [vmem:[%s1 + $0x20] sm:$0xff]
    %v29 = vld [vmem:[%s1 + $0x28] sm:$0xff]
    %v30 = vld [vmem:[%s1 + $0x30] sm:$0xff]
    %v31 = vld [vmem:[%s1 + $0x38] sm:$0xff]
    %v32 = vld [vmem:[%s1 + $0x40] sm:$0xff]
    %v33 = vld [vmem:[%s1 + $0x48] sm:$0xff]
    %v34 = vld [vmem:[%s1 + $0x50] sm:$0xff]
    %v35 = vld [vmem:[%s1 + $0x58] sm:$0xff]
    %v36 = vld [vmem:[%s1 + $0x60] sm:$0xff]
    %v37 = vld [vmem:[%s1 + $0x68] sm:$0xff]
    %v38 = vld [vmem:[%s1 + $0x70] sm:$0xff]
    %v39 = vld [vmem:[%s1 + $0x78] sm:$0xff]
    %v40 = vld [vmem:[%s1 + $0x80] sm:$0xff]
    %v41 = vld [vmem:[%s1 + $0x88] sm:$0xff]
    %v42 = vld [vmem:[%s1 + $0x90] sm:$0xff]
    %v43 = vld [vmem:[%s1 + $0x98] sm:$0xff]
    %v44 = vld [vmem:[%s1 + $0xa0] sm:$0xff]
    %v45 = vld [vmem:[%s1 + $0xa8] sm:$0xff]
    %v46 = vld [vmem:[%s1 + $0xb0] sm:$0xff]
    %v47 = vld [vmem:[%s1 + $0xb8] sm:$0xff]
    %v48 = vld [vmem:[%s1 + $0xc0] sm:$0xff]
    %v49 = vld [vmem:[%s1 + $0xc8] sm:$0xff]
    %v50 = vld [vmem:[%s1 + $0xd0] sm:$0xff]
    %v51 = vld [vmem:[%s1 + $0xd8] sm:$0xff]
    %v52 = vld [vmem:[%s1 + $0xe0] sm:$0xff]
    %v53 = vld [vmem:[%s1 + $0xe8] sm:$0xff]
    %v54 = vld [vmem:[%s1 + $0xf0] sm:$0xff]
    %v55 = vld [vmem:[%s1 + $0xf8] sm:$0xff]
    %v56 = vld [vmem:[%s1 + $0x100] sm:$0xff]
    %v57 = vld [vmem:[%s1 + $0x108] sm:$0xff]
    %v58 = vld [vmem:[%s1 + $0x110] sm:$0xff]
    %v59 = vld [vmem:[%s1 + $0x118] sm:$0xff]
    %v60 = vld [vmem:[%s1 + $0x120] sm:$0xff]
    %v61 = vld [vmem:[%s1 + $0x128] sm:$0xff]
    %v62 = vld [vmem:[%s1 + $0x130] sm:$0xff]
    %v63 = vld [vmem:[%s1 + $0x138] sm:$0xff]
    %v64 = vld [vmem:[%s1 + $0x140] sm:$0xff]
    %v65 = vld [vmem:[%s1 + $0x148] sm:$0xff]
    %v66 = vld [vmem:[%s1 + $0x150] sm:$0xff]
    %v67 = vld [vmem:[%s1 + $0x158] sm:$0xff]
    %v68 = vld [vmem:[%s1 + $0x160] sm:$0xff]
    %v69 = vld [vmem:[%s1 + $0x168] sm:$0xff]
    %v70 = vld [vmem:[%s1 + $0x170] sm:$0xff]
    %v71 = vld [vmem:[%s1 + $0x178] sm:$0xff]
    %v72 = vld [vmem:[%s1 + $0x180] sm:$0x11]
    %v73 = vld [vmem:[%s1 + $0x188] sm:$0x11]
    %v74 = vld [vmem:[%s1 + $0x190] sm:$0x11]
    %v75 = vld [vmem:[%s1 + $0x198] sm:$0x11]
    %v76 = vld [vmem:[%s1 + $0x1a0] sm:$0x11]
    %v77 = vld [vmem:[%s1 + $0x1a8] sm:$0x11]
    %v78 = vld [vmem:[%s1 + $0x1b0] sm:$0x11]
    %v79 = vld [vmem:[%s1 + $0x1b8] sm:$0x11]
    %v80 = vld [vmem:[%s1 + $0x1c0] sm:$0xff]
    %v81 = vld [vmem:[%s1 + $0x1c8] sm:$0xff]
    %v82 = vld [vmem:[%s1 + $0x1d0] sm:$0xff]
    %v83 = vld [vmem:[%s1 + $0x1d8] sm:$0xff]
    %v84 = vld [vmem:[%s1 + $0x1e0] sm:$0xff]
    %v85 = vld [vmem:[%s1 + $0x1e8] sm:$0xff]
    %v86 = vld [vmem:[%s1 + $0x1f0] sm:$0xff]
    %v87 = vld [vmem:[%s1 + $0x1f8] sm:$0xff]
    %v88 = vld [vmem:[%s1 + $0x200] sm:$0xff]
    %v89 = vld [vmem:[%s1 + $0x208] sm:$0xff]
    %v90 = vld [vmem:[%s1 + $0x210] sm:$0xff]
    %v91 = vld [vmem:[%s1 + $0x218] sm:$0xff]
    %v92 = vld [vmem:[%s1 + $0x220] sm:$0xff]
    %v93 = vld [vmem:[%s1 + $0x228] sm:$0xff]
    %v94 = vld [vmem:[%s1 + $0x230] sm:$0xff]
    %v95 = vld [vmem:[%s1 + $0x238] sm:$0xff]
    %v96 = vld [vmem:[%s1 + $0x240] sm:$0xff]
    %v97 = vld [vmem:[%s1 + $0x248] sm:$0xff]
    %v98 = vld [vmem:[%s1 + $0x250] sm:$0xff]
    %v99 = vld [vmem:[%s1 + $0x258] sm:$0xff]
    %v100 = vld [vmem:[%s1 + $0x260] sm:$0xff]
    %v101 = vld [vmem:[%s1 + $0x268] sm:$0xff]
    %v102 = vld [vmem:[%s1 + $0x270] sm:$0xff]
    %v103 = vld [vmem:[%s1 + $0x278] sm:$0xff]
    %v104 = vld [vmem:[%s1 + $0x280] sm:$0xff]
    %v105 = vld [vmem:[%s1 + $0x288] sm:$0xff]
    %v106 = vld [vmem:[%s1 + $0x290] sm:$0xff]
    %v107 = vld [vmem:[%s1 + $0x298] sm:$0xff]
    %v108 = vld [vmem:[%s1 + $0x2a0] sm:$0xff]
    %v109 = vld [vmem:[%s1 + $0x2a8] sm:$0xff]
    %v110 = vld [vmem:[%s1 + $0x2b0] sm:$0xff]
    %v111 = vld [vmem:[%s1 + $0x2b8] sm:$0xff]
    %v112 = vld [vmem:[%s1 + $0x2c0] sm:$0xff]
    %v113 = vld [vmem:[%s1 + $0x2c8] sm:$0xff]
    %v114 = vld [vmem:[%s1 + $0x2d0] sm:$0xff]
    %v115 = vld [vmem:[%s1 + $0x2d8] sm:$0xff]
    %v116 = vld [vmem:[%s1 + $0x2e0] sm:$0xff]
    %v117 = vld [vmem:[%s1 + $0x2e8] sm:$0xff]
    %v118 = vld [vmem:[%s1 + $0x2f0] sm:$0xff]
    %v119 = vld [vmem:[%s1 + $0x2f8] sm:$0xff]
    %v120 = vld [vmem:[%s1 + $0x300] sm:$0xff]
    %v121 = vld [vmem:[%s1 + $0x308] sm:$0xff]
    %v122 = vld [vmem:[%s1 + $0x310] sm:$0xff]
    %v123 = vld [vmem:[%s1 + $0x318] sm:$0xff]
    %v124 = vld [vmem:[%s1 + $0x320] sm:$0xff]
    %v125 = vld [vmem:[%s1 + $0x328] sm:$0xff]
    %v126 = vld [vmem:[%s1 + $0x330] sm:$0xff]
    %v127 = vld [vmem:[%s1 + $0x338] sm:$0xff]
    %v128 = vld [vmem:[%s1 + $0x340] sm:$0x11]
    %v129 = vld [vmem:[%s1 + $0x348] sm:$0x11]
    %v130 = vld [vmem:[%s1 + $0x350] sm:$0x11]
    %v131 = vld [vmem:[%s1 + $0x358] sm:$0x11]
    %v132 = vld [vmem:[%s1 + $0x360] sm:$0x11]
    %v133 = vld [vmem:[%s1 + $0x368] sm:$0x11]
    %v134 = vld [vmem:[%s1 + $0x370] sm:$0x11]
    %v135 = vld [vmem:[%s1 + $0x378] sm:$0x11]
    %v136 = vunpack.c.l.bf16 %v24
    %v137 = vunpack.c.h.bf16 %v24
    %v138 = vunpack.c.l.bf16 %v25
    %v139 = vunpack.c.h.bf16 %v25
    %v140 = vunpack.c.l.bf16 %v26
    %v141 = vunpack.c.h.bf16 %v26
    %v142 = vunpack.c.l.bf16 %v27
    %v143 = vunpack.c.h.bf16 %v27
    %v144 = vunpack.c.l.bf16 %v28
    %v145 = vunpack.c.h.bf16 %v28
    %v146 = vunpack.c.l.bf16 %v29
    %v147 = vunpack.c.h.bf16 %v29
    %v148 = vunpack.c.l.bf16 %v30
    %v149 = vunpack.c.h.bf16 %v30
    %v150 = vunpack.c.l.bf16 %v31
    %v151 = vunpack.c.h.bf16 %v31
    %v152 = vunpack.c.l.bf16 %v32
    %v153 = vunpack.c.h.bf16 %v32
    %v154 = vunpack.c.l.bf16 %v33
    %v155 = vunpack.c.h.bf16 %v33
    %v156 = vunpack.c.l.bf16 %v34
    %v157 = vunpack.c.h.bf16 %v34
    %v158 = vunpack.c.l.bf16 %v35
    %v159 = vunpack.c.h.bf16 %v35
    %v160 = vunpack.c.l.bf16 %v36
    %v161 = vunpack.c.h.bf16 %v36
    %v162 = vunpack.c.l.bf16 %v37
    %v163 = vunpack.c.h.bf16 %v37
    %v164 = vunpack.c.l.bf16 %v38
    %v165 = vunpack.c.h.bf16 %v38
    %v166 = vunpack.c.l.bf16 %v39
    %v167 = vunpack.c.h.bf16 %v39
    %v168 = vunpack.c.l.bf16 %v40
    %v169 = vunpack.c.h.bf16 %v40
    %v170 = vunpack.c.l.bf16 %v41
    %v171 = vunpack.c.h.bf16 %v41
    %v172 = vunpack.c.l.bf16 %v42
    %v173 = vunpack.c.h.bf16 %v42
    %v174 = vunpack.c.l.bf16 %v43
    %v175 = vunpack.c.h.bf16 %v43
    %v176 = vunpack.c.l.bf16 %v44
    %v177 = vunpack.c.h.bf16 %v44
    %v178 = vunpack.c.l.bf16 %v45
    %v179 = vunpack.c.h.bf16 %v45
    %v180 = vunpack.c.l.bf16 %v46
    %v181 = vunpack.c.h.bf16 %v46
    %v182 = vunpack.c.l.bf16 %v47
    %v183 = vunpack.c.h.bf16 %v47
    %v184 = vunpack.c.l.bf16 %v48
    %v185 = vunpack.c.h.bf16 %v48
    %v186 = vunpack.c.l.bf16 %v49
    %v187 = vunpack.c.h.bf16 %v49
    %v188 = vunpack.c.l.bf16 %v50
    %v189 = vunpack.c.h.bf16 %v50
    %v190 = vunpack.c.l.bf16 %v51
    %v191 = vunpack.c.h.bf16 %v51
    %v192 = vunpack.c.l.bf16 %v52
    %v193 = vunpack.c.h.bf16 %v52
    %v194 = vunpack.c.l.bf16 %v53
    %v195 = vunpack.c.h.bf16 %v53
    %v196 = vunpack.c.l.bf16 %v54
    %v197 = vunpack.c.h.bf16 %v54
    %v198 = vunpack.c.l.bf16 %v55
    %v199 = vunpack.c.h.bf16 %v55
    %v200 = vunpack.c.l.bf16 %v56
    %v201 = vunpack.c.h.bf16 %v56
    %v202 = vunpack.c.l.bf16 %v57
    %v203 = vunpack.c.h.bf16 %v57
    %v204 = vunpack.c.l.bf16 %v58
    %v205 = vunpack.c.h.bf16 %v58
    %v206 = vunpack.c.l.bf16 %v59
    %v207 = vunpack.c.h.bf16 %v59
    %v208 = vunpack.c.l.bf16 %v60
    %v209 = vunpack.c.h.bf16 %v60
    %v210 = vunpack.c.l.bf16 %v61
    %v211 = vunpack.c.h.bf16 %v61
    %v212 = vunpack.c.l.bf16 %v62
    %v213 = vunpack.c.h.bf16 %v62
    %v214 = vunpack.c.l.bf16 %v63
    %v215 = vunpack.c.h.bf16 %v63
    %v216 = vunpack.c.l.bf16 %v64
    %v217 = vunpack.c.h.bf16 %v64
    %v218 = vunpack.c.l.bf16 %v65
    %v219 = vunpack.c.h.bf16 %v65
    %v220 = vunpack.c.l.bf16 %v66
    %v221 = vunpack.c.h.bf16 %v66
    %v222 = vunpack.c.l.bf16 %v67
    %v223 = vunpack.c.h.bf16 %v67
    %v224 = vunpack.c.l.bf16 %v68
    %v225 = vunpack.c.h.bf16 %v68
    %v226 = vunpack.c.l.bf16 %v69
    %v227 = vunpack.c.h.bf16 %v69
    %v228 = vunpack.c.l.bf16 %v70
    %v229 = vunpack.c.h.bf16 %v70
    %v230 = vunpack.c.l.bf16 %v71
    %v231 = vunpack.c.h.bf16 %v71
    %v232 = vunpack.c.l.bf16 %v72
    %v233 = vunpack.c.h.bf16 %v72
    %v234 = vunpack.c.l.bf16 %v73
    %v235 = vunpack.c.h.bf16 %v73
    %v236 = vunpack.c.l.bf16 %v74
    %v237 = vunpack.c.h.bf16 %v74
    %v238 = vunpack.c.l.bf16 %v75
    %v239 = vunpack.c.h.bf16 %v75
    %v240 = vunpack.c.l.bf16 %v76
    %v241 = vunpack.c.h.bf16 %v76
    %v242 = vunpack.c.l.bf16 %v77
    %v243 = vunpack.c.h.bf16 %v77
    %v244 = vunpack.c.l.bf16 %v78
    %v245 = vunpack.c.h.bf16 %v78
    %v246 = vunpack.c.l.bf16 %v79
    %v247 = vunpack.c.h.bf16 %v79
    %v248 = vunpack.c.l.bf16 %v80
    %v249 = vunpack.c.h.bf16 %v80
    %v250 = vunpack.c.l.bf16 %v81
    %v251 = vunpack.c.h.bf16 %v81
    %v252 = vunpack.c.l.bf16 %v82
    %v253 = vunpack.c.h.bf16 %v82
    %v254 = vunpack.c.l.bf16 %v83
    %v255 = vunpack.c.h.bf16 %v83
    %v256 = vunpack.c.l.bf16 %v84
    %v257 = vunpack.c.h.bf16 %v84
    %v258 = vunpack.c.l.bf16 %v85
    %v259 = vunpack.c.h.bf16 %v85
    %v260 = vunpack.c.l.bf16 %v86
    %v261 = vunpack.c.h.bf16 %v86
    %v262 = vunpack.c.l.bf16 %v87
    %v263 = vunpack.c.h.bf16 %v87
    %v264 = vunpack.c.l.bf16 %v88
    %v265 = vunpack.c.h.bf16 %v88
    %v266 = vunpack.c.l.bf16 %v89
    %v267 = vunpack.c.h.bf16 %v89
    %v268 = vunpack.c.l.bf16 %v90
    %v269 = vunpack.c.h.bf16 %v90
    %v270 = vunpack.c.l.bf16 %v91
    %v271 = vunpack.c.h.bf16 %v91
    %v272 = vunpack.c.l.bf16 %v92
    %v273 = vunpack.c.h.bf16 %v92
    %v274 = vunpack.c.l.bf16 %v93
    %v275 = vunpack.c.h.bf16 %v93
    %v276 = vunpack.c.l.bf16 %v94
    %v277 = vunpack.c.h.bf16 %v94
    %v278 = vunpack.c.l.bf16 %v95
    %v279 = vunpack.c.h.bf16 %v95
    %v280 = vunpack.c.l.bf16 %v96
    %v281 = vunpack.c.h.bf16 %v96
    %v282 = vunpack.c.l.bf16 %v97
    %v283 = vunpack.c.h.bf16 %v97
    %v284 = vunpack.c.l.bf16 %v98
    %v285 = vunpack.c.h.bf16 %v98
    %v286 = vunpack.c.l.bf16 %v99
    %v287 = vunpack.c.h.bf16 %v99
    %v288 = vunpack.c.l.bf16 %v100
    %v289 = vunpack.c.h.bf16 %v100
    %v290 = vunpack.c.l.bf16 %v101
    %v291 = vunpack.c.h.bf16 %v101
    %v292 = vunpack.c.l.bf16 %v102
    %v293 = vunpack.c.h.bf16 %v102
    %v294 = vunpack.c.l.bf16 %v103
    %v295 = vunpack.c.h.bf16 %v103
    %v296 = vunpack.c.l.bf16 %v104
    %v297 = vunpack.c.h.bf16 %v104
    %v298 = vunpack.c.l.bf16 %v105
    %v299 = vunpack.c.h.bf16 %v105
    %v300 = vunpack.c.l.bf16 %v106
    %v301 = vunpack.c.h.bf16 %v106
    %v302 = vunpack.c.l.bf16 %v107
    %v303 = vunpack.c.h.bf16 %v107
    %v304 = vunpack.c.l.bf16 %v108
    %v305 = vunpack.c.h.bf16 %v108
    %v306 = vunpack.c.l.bf16 %v109
    %v307 = vunpack.c.h.bf16 %v109
    %v308 = vunpack.c.l.bf16 %v110
    %v309 = vunpack.c.h.bf16 %v110
    %v310 = vunpack.c.l.bf16 %v111
    %v311 = vunpack.c.h.bf16 %v111
    %v312 = vunpack.c.l.bf16 %v112
    %v313 = vunpack.c.h.bf16 %v112
    %v314 = vunpack.c.l.bf16 %v113
    %v315 = vunpack.c.h.bf16 %v113
    %v316 = vunpack.c.l.bf16 %v114
    %v317 = vunpack.c.h.bf16 %v114
    %v318 = vunpack.c.l.bf16 %v115
    %v319 = vunpack.c.h.bf16 %v115
    %v320 = vunpack.c.l.bf16 %v116
    %v321 = vunpack.c.h.bf16 %v116
    %v322 = vunpack.c.l.bf16 %v117
    %v323 = vunpack.c.h.bf16 %v117
    %v324 = vunpack.c.l.bf16 %v118
    %v325 = vunpack.c.h.bf16 %v118
    %v326 = vunpack.c.l.bf16 %v119
    %v327 = vunpack.c.h.bf16 %v119
    %v328 = vunpack.c.l.bf16 %v120
    %v329 = vunpack.c.h.bf16 %v120
    %v330 = vunpack.c.l.bf16 %v121
    %v331 = vunpack.c.h.bf16 %v121
    %v332 = vunpack.c.l.bf16 %v122
    %v333 = vunpack.c.h.bf16 %v122
    %v334 = vunpack.c.l.bf16 %v123
    %v335 = vunpack.c.h.bf16 %v123
    %v336 = vunpack.c.l.bf16 %v124
    %v337 = vunpack.c.h.bf16 %v124
    %v338 = vunpack.c.l.bf16 %v125
    %v339 = vunpack.c.h.bf16 %v125
    %v340 = vunpack.c.l.bf16 %v126
    %v341 = vunpack.c.h.bf16 %v126
    %v342 = vunpack.c.l.bf16 %v127
    %v343 = vunpack.c.h.bf16 %v127
    %v344 = vunpack.c.l.bf16 %v128
    %v345 = vunpack.c.h.bf16 %v128
    %v346 = vunpack.c.l.bf16 %v129
    %v347 = vunpack.c.h.bf16 %v129
    %v348 = vunpack.c.l.bf16 %v130
    %v349 = vunpack.c.h.bf16 %v130
    %v350 = vunpack.c.l.bf16 %v131
    %v351 = vunpack.c.h.bf16 %v131
    %v352 = vunpack.c.l.bf16 %v132
    %v353 = vunpack.c.h.bf16 %v132
    %v354 = vunpack.c.l.bf16 %v133
    %v355 = vunpack.c.h.bf16 %v133
    %v356 = vunpack.c.l.bf16 %v134
    %v357 = vunpack.c.h.bf16 %v134
    %v358 = vunpack.c.l.bf16 %v135
    %v359 = vunpack.c.h.bf16 %v135
    %v360 = vadd.f32 %v136, %v152
    %v361 = vadd.f32 %v360, %v168
    %v362 = vadd.f32 %v361, %v184
    %v363 = vadd.f32 %v362, %v200
    %v364 = vadd.f32 %v363, %v216
    %vm365 = vcmask 1040384
    %v366 = vsel %vm365, %v232, 0.0
    %v367 = vadd.f32 %v364, %v366
    %v368 = vrot.slane %v367, 4
    %v369 = vadd.f32 %v367, %v368
    %v370 = vrot.slane %v369, 2
    %v371 = vadd.f32 %v369, %v370
    %v372 = vrot.slane %v371, 1
    %v373 = vadd.f32 %v371, %v372
    %v374 = vadd.f32 %v137, %v153
    %v375 = vadd.f32 %v374, %v169
    %v376 = vadd.f32 %v375, %v185
    %v377 = vadd.f32 %v376, %v201
    %v378 = vadd.f32 %v377, %v217
    %v379 = vsel %vm365, %v233, 0.0
    %v380 = vadd.f32 %v378, %v379
    %v381 = vrot.slane %v380, 4
    %v382 = vadd.f32 %v380, %v381
    %v383 = vrot.slane %v382, 2
    %v384 = vadd.f32 %v382, %v383
    %v385 = vrot.slane %v384, 1
    %v386 = vadd.f32 %v384, %v385
    %v387 = vadd.f32 %v138, %v154
    %v388 = vadd.f32 %v387, %v170
    %v389 = vadd.f32 %v388, %v186
    %v390 = vadd.f32 %v389, %v202
    %v391 = vadd.f32 %v390, %v218
    %v392 = vsel %vm365, %v234, 0.0
    %v393 = vadd.f32 %v391, %v392
    %v394 = vrot.slane %v393, 4
    %v395 = vadd.f32 %v393, %v394
    %v396 = vrot.slane %v395, 2
    %v397 = vadd.f32 %v395, %v396
    %v398 = vrot.slane %v397, 1
    %v399 = vadd.f32 %v397, %v398
    %v400 = vadd.f32 %v139, %v155
    %v401 = vadd.f32 %v400, %v171
    %v402 = vadd.f32 %v401, %v187
    %v403 = vadd.f32 %v402, %v203
    %v404 = vadd.f32 %v403, %v219
    %v405 = vsel %vm365, %v235, 0.0
    %v406 = vadd.f32 %v404, %v405
    %v407 = vrot.slane %v406, 4
    %v408 = vadd.f32 %v406, %v407
    %v409 = vrot.slane %v408, 2
    %v410 = vadd.f32 %v408, %v409
    %v411 = vrot.slane %v410, 1
    %v412 = vadd.f32 %v410, %v411
    %v413 = vadd.f32 %v140, %v156
    %v414 = vadd.f32 %v413, %v172
    %v415 = vadd.f32 %v414, %v188
    %v416 = vadd.f32 %v415, %v204
    %v417 = vadd.f32 %v416, %v220
    %v418 = vsel %vm365, %v236, 0.0
    %v419 = vadd.f32 %v417, %v418
    %v420 = vrot.slane %v419, 4
    %v421 = vadd.f32 %v419, %v420
    %v422 = vrot.slane %v421, 2
    %v423 = vadd.f32 %v421, %v422
    %v424 = vrot.slane %v423, 1
    %v425 = vadd.f32 %v423, %v424
    %v426 = vadd.f32 %v141, %v157
    %v427 = vadd.f32 %v426, %v173
    %v428 = vadd.f32 %v427, %v189
    %v429 = vadd.f32 %v428, %v205
    %v430 = vadd.f32 %v429, %v221
    %v431 = vsel %vm365, %v237, 0.0
    %v432 = vadd.f32 %v430, %v431
    %v433 = vrot.slane %v432, 4
    %v434 = vadd.f32 %v432, %v433
    %v435 = vrot.slane %v434, 2
    %v436 = vadd.f32 %v434, %v435
    %v437 = vrot.slane %v436, 1
    %v438 = vadd.f32 %v436, %v437
    %v439 = vadd.f32 %v142, %v158
    %v440 = vadd.f32 %v439, %v174
    %v441 = vadd.f32 %v440, %v190
    %v442 = vadd.f32 %v441, %v206
    %v443 = vadd.f32 %v442, %v222
    %v444 = vsel %vm365, %v238, 0.0
    %v445 = vadd.f32 %v443, %v444
    %v446 = vrot.slane %v445, 4
    %v447 = vadd.f32 %v445, %v446
    %v448 = vrot.slane %v447, 2
    %v449 = vadd.f32 %v447, %v448
    %v450 = vrot.slane %v449, 1
    %v451 = vadd.f32 %v449, %v450
    %v452 = vadd.f32 %v143, %v159
    %v453 = vadd.f32 %v452, %v175
    %v454 = vadd.f32 %v453, %v191
    %v455 = vadd.f32 %v454, %v207
    %v456 = vadd.f32 %v455, %v223
    %v457 = vsel %vm365, %v239, 0.0
    %v458 = vadd.f32 %v456, %v457
    %v459 = vrot.slane %v458, 4
    %v460 = vadd.f32 %v458, %v459
    %v461 = vrot.slane %v460, 2
    %v462 = vadd.f32 %v460, %v461
    %v463 = vrot.slane %v462, 1
    %v464 = vadd.f32 %v462, %v463
    %v465 = vadd.f32 %v144, %v160
    %v466 = vadd.f32 %v465, %v176
    %v467 = vadd.f32 %v466, %v192
    %v468 = vadd.f32 %v467, %v208
    %v469 = vadd.f32 %v468, %v224
    %v470 = vsel %vm365, %v240, 0.0
    %v471 = vadd.f32 %v469, %v470
    %v472 = vrot.slane %v471, 4
    %v473 = vadd.f32 %v471, %v472
    %v474 = vrot.slane %v473, 2
    %v475 = vadd.f32 %v473, %v474
    %v476 = vrot.slane %v475, 1
    %v477 = vadd.f32 %v475, %v476
    %v478 = vadd.f32 %v145, %v161
    %v479 = vadd.f32 %v478, %v177
    %v480 = vadd.f32 %v479, %v193
    %v481 = vadd.f32 %v480, %v209
    %v482 = vadd.f32 %v481, %v225
    %v483 = vsel %vm365, %v241, 0.0
    %v484 = vadd.f32 %v482, %v483
    %v485 = vrot.slane %v484, 4
    %v486 = vadd.f32 %v484, %v485
    %v487 = vrot.slane %v486, 2
    %v488 = vadd.f32 %v486, %v487
    %v489 = vrot.slane %v488, 1
    %v490 = vadd.f32 %v488, %v489
    %v491 = vadd.f32 %v146, %v162
    %v492 = vadd.f32 %v491, %v178
    %v493 = vadd.f32 %v492, %v194
    %v494 = vadd.f32 %v493, %v210
    %v495 = vadd.f32 %v494, %v226
    %v496 = vsel %vm365, %v242, 0.0
    %v497 = vadd.f32 %v495, %v496
    %v498 = vrot.slane %v497, 4
    %v499 = vadd.f32 %v497, %v498
    %v500 = vrot.slane %v499, 2
    %v501 = vadd.f32 %v499, %v500
    %v502 = vrot.slane %v501, 1
    %v503 = vadd.f32 %v501, %v502
    %v504 = vadd.f32 %v147, %v163
    %v505 = vadd.f32 %v504, %v179
    %v506 = vadd.f32 %v505, %v195
    %v507 = vadd.f32 %v506, %v211
    %v508 = vadd.f32 %v507, %v227
    %v509 = vsel %vm365, %v243, 0.0
    %v510 = vadd.f32 %v508, %v509
    %v511 = vrot.slane %v510, 4
    %v512 = vadd.f32 %v510, %v511
    %v513 = vrot.slane %v512, 2
    %v514 = vadd.f32 %v512, %v513
    %v515 = vrot.slane %v514, 1
    %v516 = vadd.f32 %v514, %v515
    %v517 = vadd.f32 %v148, %v164
    %v518 = vadd.f32 %v517, %v180
    %v519 = vadd.f32 %v518, %v196
    %v520 = vadd.f32 %v519, %v212
    %v521 = vadd.f32 %v520, %v228
    %v522 = vsel %vm365, %v244, 0.0
    %v523 = vadd.f32 %v521, %v522
    %v524 = vrot.slane %v523, 4
    %v525 = vadd.f32 %v523, %v524
    %v526 = vrot.slane %v525, 2
    %v527 = vadd.f32 %v525, %v526
    %v528 = vrot.slane %v527, 1
    %v529 = vadd.f32 %v527, %v528
    %v530 = vadd.f32 %v149, %v165
    %v531 = vadd.f32 %v530, %v181
    %v532 = vadd.f32 %v531, %v197
    %v533 = vadd.f32 %v532, %v213
    %v534 = vadd.f32 %v533, %v229
    %v535 = vsel %vm365, %v245, 0.0
    %v536 = vadd.f32 %v534, %v535
    %v537 = vrot.slane %v536, 4
    %v538 = vadd.f32 %v536, %v537
    %v539 = vrot.slane %v538, 2
    %v540 = vadd.f32 %v538, %v539
    %v541 = vrot.slane %v540, 1
    %v542 = vadd.f32 %v540, %v541
    %v543 = vadd.f32 %v150, %v166
    %v544 = vadd.f32 %v543, %v182
    %v545 = vadd.f32 %v544, %v198
    %v546 = vadd.f32 %v545, %v214
    %v547 = vadd.f32 %v546, %v230
    %v548 = vsel %vm365, %v246, 0.0
    %v549 = vadd.f32 %v547, %v548
    %v550 = vrot.slane %v549, 4
    %v551 = vadd.f32 %v549, %v550
    %v552 = vrot.slane %v551, 2
    %v553 = vadd.f32 %v551, %v552
    %v554 = vrot.slane %v553, 1
    %v555 = vadd.f32 %v553, %v554
    %v556 = vadd.f32 %v151, %v167
    %v557 = vadd.f32 %v556, %v183
    %v558 = vadd.f32 %v557, %v199
    %v559 = vadd.f32 %v558, %v215
    %v560 = vadd.f32 %v559, %v231
    %v561 = vsel %vm365, %v247, 0.0
    %v562 = vadd.f32 %v560, %v561
    %v563 = vrot.slane %v562, 4
    %v564 = vadd.f32 %v562, %v563
    %v565 = vrot.slane %v564, 2
    %v566 = vadd.f32 %v564, %v565
    %v567 = vrot.slane %v566, 1
    %v568 = vadd.f32 %v566, %v567
    %v569 = vadd.f32 %v248, %v264
    %v570 = vadd.f32 %v569, %v280
    %v571 = vadd.f32 %v570, %v296
    %v572 = vadd.f32 %v571, %v312
    %v573 = vadd.f32 %v572, %v328
    %v574 = vsel %vm365, %v344, 0.0
    %v575 = vadd.f32 %v573, %v574
    %v576 = vrot.slane %v575, 4
    %v577 = vadd.f32 %v575, %v576
    %v578 = vrot.slane %v577, 2
    %v579 = vadd.f32 %v577, %v578
    %v580 = vrot.slane %v579, 1
    %v581 = vadd.f32 %v579, %v580
    %v582 = vadd.f32 %v249, %v265
    %v583 = vadd.f32 %v582, %v281
    %v584 = vadd.f32 %v583, %v297
    %v585 = vadd.f32 %v584, %v313
    %v586 = vadd.f32 %v585, %v329
    %v587 = vsel %vm365, %v345, 0.0
    %v588 = vadd.f32 %v586, %v587
    %v589 = vrot.slane %v588, 4
    %v590 = vadd.f32 %v588, %v589
    %v591 = vrot.slane %v590, 2
    %v592 = vadd.f32 %v590, %v591
    %v593 = vrot.slane %v592, 1
    %v594 = vadd.f32 %v592, %v593
    %v595 = vadd.f32 %v250, %v266
    %v596 = vadd.f32 %v595, %v282
    %v597 = vadd.f32 %v596, %v298
    %v598 = vadd.f32 %v597, %v314
    %v599 = vadd.f32 %v598, %v330
    %v600 = vsel %vm365, %v346, 0.0
    %v601 = vadd.f32 %v599, %v600
    %v602 = vrot.slane %v601, 4
    %v603 = vadd.f32 %v601, %v602
    %v604 = vrot.slane %v603, 2
    %v605 = vadd.f32 %v603, %v604
    %v606 = vrot.slane %v605, 1
    %v607 = vadd.f32 %v605, %v606
    %v608 = vadd.f32 %v251, %v267
    %v609 = vadd.f32 %v608, %v283
    %v610 = vadd.f32 %v609, %v299
    %v611 = vadd.f32 %v610, %v315
    %v612 = vadd.f32 %v611, %v331
    %v613 = vsel %vm365, %v347, 0.0
    %v614 = vadd.f32 %v612, %v613
    %v615 = vrot.slane %v614, 4
    %v616 = vadd.f32 %v614, %v615
    %v617 = vrot.slane %v616, 2
    %v618 = vadd.f32 %v616, %v617
    %v619 = vrot.slane %v618, 1
    %v620 = vadd.f32 %v618, %v619
    %v621 = vadd.f32 %v252, %v268
    %v622 = vadd.f32 %v621, %v284
    %v623 = vadd.f32 %v622, %v300
    %v624 = vadd.f32 %v623, %v316
    %v625 = vadd.f32 %v624, %v332
    %v626 = vsel %vm365, %v348, 0.0
    %v627 = vadd.f32 %v625, %v626
    %v628 = vrot.slane %v627, 4
    %v629 = vadd.f32 %v627, %v628
    %v630 = vrot.slane %v629, 2
    %v631 = vadd.f32 %v629, %v630
    %v632 = vrot.slane %v631, 1
    %v633 = vadd.f32 %v631, %v632
    %v634 = vadd.f32 %v253, %v269
    %v635 = vadd.f32 %v634, %v285
    %v636 = vadd.f32 %v635, %v301
    %v637 = vadd.f32 %v636, %v317
    %v638 = vadd.f32 %v637, %v333
    %v639 = vsel %vm365, %v349, 0.0
    %v640 = vadd.f32 %v638, %v639
    %v641 = vrot.slane %v640, 4
    %v642 = vadd.f32 %v640, %v641
    %v643 = vrot.slane %v642, 2
    %v644 = vadd.f32 %v642, %v643
    %v645 = vrot.slane %v644, 1
    %v646 = vadd.f32 %v644, %v645
    %v647 = vadd.f32 %v254, %v270
    %v648 = vadd.f32 %v647, %v286
    %v649 = vadd.f32 %v648, %v302
    %v650 = vadd.f32 %v649, %v318
    %v651 = vadd.f32 %v650, %v334
    %v652 = vsel %vm365, %v350, 0.0
    %v653 = vadd.f32 %v651, %v652
    %v654 = vrot.slane %v653, 4
    %v655 = vadd.f32 %v653, %v654
    %v656 = vrot.slane %v655, 2
    %v657 = vadd.f32 %v655, %v656
    %v658 = vrot.slane %v657, 1
    %v659 = vadd.f32 %v657, %v658
    %v660 = vadd.f32 %v255, %v271
    %v661 = vadd.f32 %v660, %v287
    %v662 = vadd.f32 %v661, %v303
    %v663 = vadd.f32 %v662, %v319
    %v664 = vadd.f32 %v663, %v335
    %v665 = vsel %vm365, %v351, 0.0
    %v666 = vadd.f32 %v664, %v665
    %v667 = vrot.slane %v666, 4
    %v668 = vadd.f32 %v666, %v667
    %v669 = vrot.slane %v668, 2
    %v670 = vadd.f32 %v668, %v669
    %v671 = vrot.slane %v670, 1
    %v672 = vadd.f32 %v670, %v671
    %v673 = vadd.f32 %v256, %v272
    %v674 = vadd.f32 %v673, %v288
    %v675 = vadd.f32 %v674, %v304
    %v676 = vadd.f32 %v675, %v320
    %v677 = vadd.f32 %v676, %v336
    %v678 = vsel %vm365, %v352, 0.0
    %v679 = vadd.f32 %v677, %v678
    %v680 = vrot.slane %v679, 4
    %v681 = vadd.f32 %v679, %v680
    %v682 = vrot.slane %v681, 2
    %v683 = vadd.f32 %v681, %v682
    %v684 = vrot.slane %v683, 1
    %v685 = vadd.f32 %v683, %v684
    %v686 = vadd.f32 %v257, %v273
    %v687 = vadd.f32 %v686, %v289
    %v688 = vadd.f32 %v687, %v305
    %v689 = vadd.f32 %v688, %v321
    %v690 = vadd.f32 %v689, %v337
    %v691 = vsel %vm365, %v353, 0.0
    %v692 = vadd.f32 %v690, %v691
    %v693 = vrot.slane %v692, 4
    %v694 = vadd.f32 %v692, %v693
    %v695 = vrot.slane %v694, 2
    %v696 = vadd.f32 %v694, %v695
    %v697 = vrot.slane %v696, 1
    %v698 = vadd.f32 %v696, %v697
    %v699 = vadd.f32 %v258, %v274
    %v700 = vadd.f32 %v699, %v290
    %v701 = vadd.f32 %v700, %v306
    %v702 = vadd.f32 %v701, %v322
    %v703 = vadd.f32 %v702, %v338
    %v704 = vsel %vm365, %v354, 0.0
    %v705 = vadd.f32 %v703, %v704
    %v706 = vrot.slane %v705, 4
    %v707 = vadd.f32 %v705, %v706
    %v708 = vrot.slane %v707, 2
    %v709 = vadd.f32 %v707, %v708
    %v710 = vrot.slane %v709, 1
    %v711 = vadd.f32 %v709, %v710
    %v712 = vadd.f32 %v259, %v275
    %v713 = vadd.f32 %v712, %v291
    %v714 = vadd.f32 %v713, %v307
    %v715 = vadd.f32 %v714, %v323
    %v716 = vadd.f32 %v715, %v339
    %v717 = vsel %vm365, %v355, 0.0
    %v718 = vadd.f32 %v716, %v717
    %v719 = vrot.slane %v718, 4
    %v720 = vadd.f32 %v718, %v719
    %v721 = vrot.slane %v720, 2
    %v722 = vadd.f32 %v720, %v721
    %v723 = vrot.slane %v722, 1
    %v724 = vadd.f32 %v722, %v723
    %v725 = vadd.f32 %v260, %v276
    %v726 = vadd.f32 %v725, %v292
    %v727 = vadd.f32 %v726, %v308
    %v728 = vadd.f32 %v727, %v324
    %v729 = vadd.f32 %v728, %v340
    %v730 = vsel %vm365, %v356, 0.0
    %v731 = vadd.f32 %v729, %v730
    %v732 = vrot.slane %v731, 4
    %v733 = vadd.f32 %v731, %v732
    %v734 = vrot.slane %v733, 2
    %v735 = vadd.f32 %v733, %v734
    %v736 = vrot.slane %v735, 1
    %v737 = vadd.f32 %v735, %v736
    %v738 = vadd.f32 %v261, %v277
    %v739 = vadd.f32 %v738, %v293
    %v740 = vadd.f32 %v739, %v309
    %v741 = vadd.f32 %v740, %v325
    %v742 = vadd.f32 %v741, %v341
    %v743 = vsel %vm365, %v357, 0.0
    %v744 = vadd.f32 %v742, %v743
    %v745 = vrot.slane %v744, 4
    %v746 = vadd.f32 %v744, %v745
    %v747 = vrot.slane %v746, 2
    %v748 = vadd.f32 %v746, %v747
    %v749 = vrot.slane %v748, 1
    %v750 = vadd.f32 %v748, %v749
    %v751 = vadd.f32 %v262, %v278
    %v752 = vadd.f32 %v751, %v294
    %v753 = vadd.f32 %v752, %v310
    %v754 = vadd.f32 %v753, %v326
    %v755 = vadd.f32 %v754, %v342
    %v756 = vsel %vm365, %v358, 0.0
    %v757 = vadd.f32 %v755, %v756
    %v758 = vrot.slane %v757, 4
    %v759 = vadd.f32 %v757, %v758
    %v760 = vrot.slane %v759, 2
    %v761 = vadd.f32 %v759, %v760
    %v762 = vrot.slane %v761, 1
    %v763 = vadd.f32 %v761, %v762
    %v764 = vadd.f32 %v263, %v279
    %v765 = vadd.f32 %v764, %v295
    %v766 = vadd.f32 %v765, %v311
    %v767 = vadd.f32 %v766, %v327
    %v768 = vadd.f32 %v767, %v343
    %v769 = vsel %vm365, %v359, 0.0
    %v770 = vadd.f32 %v768, %v769
    %v771 = vrot.slane %v770, 4
    %v772 = vadd.f32 %v770, %v771
    %v773 = vrot.slane %v772, 2
    %v774 = vadd.f32 %v772, %v773
    %v775 = vrot.slane %v774, 1
    %v776 = vadd.f32 %v774, %v775
    %v777 = vrcp.pop 49.0
    %v778 = vmul.f32 %v373, %v777
    %v779 = vmul.f32 %v386, %v777
    %v780 = vmul.f32 %v399, %v777
    %v781 = vmul.f32 %v412, %v777
    %v782 = vmul.f32 %v425, %v777
    %v783 = vmul.f32 %v438, %v777
    %v784 = vmul.f32 %v451, %v777
    %v785 = vmul.f32 %v464, %v777
    %v786 = vmul.f32 %v477, %v777
    %v787 = vmul.f32 %v490, %v777
    %v788 = vmul.f32 %v503, %v777
    %v789 = vmul.f32 %v516, %v777
    %v790 = vmul.f32 %v529, %v777
    %v791 = vmul.f32 %v542, %v777
    %v792 = vmul.f32 %v555, %v777
    %v793 = vmul.f32 %v568, %v777
    %v794 = vmul.f32 %v581, %v777
    %v795 = vmul.f32 %v594, %v777
    %v796 = vmul.f32 %v607, %v777
    %v797 = vmul.f32 %v620, %v777
    %v798 = vmul.f32 %v633, %v777
    %v799 = vmul.f32 %v646, %v777
    %v800 = vmul.f32 %v659, %v777
    %v801 = vmul.f32 %v672, %v777
    %v802 = vmul.f32 %v685, %v777
    %v803 = vmul.f32 %v698, %v777
    %v804 = vmul.f32 %v711, %v777
    %v805 = vmul.f32 %v724, %v777
    %v806 = vmul.f32 %v737, %v777
    %v807 = vmul.f32 %v750, %v777
    %v808 = vmul.f32 %v763, %v777
    %v809 = vmul.f32 %v776, %v777
    %v810 = vmax.f32 %v22, 0.0
    %v811 = vmax.f32 %v23, 0.0
    %v812 = vmax.f32 %v778, 0.0
    %v813 = vmax.f32 %v779, 0.0
    %v814 = vmax.f32 %v780, 0.0
    %v815 = vmax.f32 %v781, 0.0
    %v816 = vmax.f32 %v782, 0.0
    %v817 = vmax.f32 %v783, 0.0
    %v818 = vmax.f32 %v784, 0.0
    %v819 = vmax.f32 %v785, 0.0
    %v820 = vmax.f32 %v786, 0.0
    %v821 = vmax.f32 %v787, 0.0
    %v822 = vmax.f32 %v788, 0.0
    %v823 = vmax.f32 %v789, 0.0
    %v824 = vmax.f32 %v790, 0.0
    %v825 = vmax.f32 %v791, 0.0
    %v826 = vmax.f32 %v792, 0.0
    %v827 = vmax.f32 %v793, 0.0
    %v828 = vmax.f32 %v794, 0.0
    %v829 = vmax.f32 %v795, 0.0
    %v830 = vmax.f32 %v796, 0.0
    %v831 = vmax.f32 %v797, 0.0
    %v832 = vmax.f32 %v798, 0.0
    %v833 = vmax.f32 %v799, 0.0
    %v834 = vmax.f32 %v800, 0.0
    %v835 = vmax.f32 %v801, 0.0
    %v836 = vmax.f32 %v802, 0.0
    %v837 = vmax.f32 %v803, 0.0
    %v838 = vmax.f32 %v804, 0.0
    %v839 = vmax.f32 %v805, 0.0
    %v840 = vmax.f32 %v806, 0.0
    %v841 = vmax.f32 %v807, 0.0
    %v842 = vmax.f32 %v808, 0.0
    %v843 = vmax.f32 %v809, 0.0
    %v844 = vld [vmem:[%s2] sm:$0xff]
    %v845 = vld [vmem:[%s2 + $0x8] sm:$0xff]
    %v846 = vld [vmem:[%s2 + $0x10] sm:$0xff]
    %v847 = vld [vmem:[%s2 + $0x18] sm:$0xff]
    %v848 = vld [vmem:[%s2 + $0x20] sm:$0xff]
    %v849 = vld [vmem:[%s2 + $0x28] sm:$0xff]
    %v850 = vld [vmem:[%s3] sm:$0xff]
    %v851 = vld [vmem:[%s3 + $0x8] sm:$0xff]
    %v852 = vld [vmem:[%s3 + $0x10] sm:$0xff]
    %v853 = vld [vmem:[%s3 + $0x18] sm:$0xff]
    %v854 = vld [vmem:[%s3 + $0x20] sm:$0xff]
    %v855 = vld [vmem:[%s3 + $0x28] sm:$0xff]
    %v856 = vld [vmem:[%s3 + $0x30] sm:$0xff]
    %v857 = vld [vmem:[%s3 + $0x38] sm:$0xff]
    %v858 = vld [vmem:[%s3 + $0x40] sm:$0xff]
    %v859 = vld [vmem:[%s3 + $0x48] sm:$0xff]
    %v860 = vld [vmem:[%s3 + $0x50] sm:$0xff]
    %v861 = vld [vmem:[%s3 + $0x58] sm:$0xff]
    %v862 = vld [vmem:[%s3 + $0x60] sm:$0xff]
    %v863 = vld [vmem:[%s3 + $0x68] sm:$0xff]
    %v864 = vld [vmem:[%s3 + $0x70] sm:$0xff]
    %v865 = vld [vmem:[%s3 + $0x78] sm:$0xff]
    %vm898 = vcmask 1041409
    %v899 = vsel %vm898, %v828, %v812
    %v900 = vsel %vm898, %v829, %v813
    %v901 = vsel %vm898, %v830, %v814
    %v902 = vsel %vm898, %v831, %v815
    %v903 = vsel %vm898, %v832, %v816
    %v904 = vsel %vm898, %v833, %v817
    %v905 = vsel %vm898, %v834, %v818
    %v906 = vsel %vm898, %v835, %v819
    %v907 = vsel %vm898, %v836, %v820
    %v908 = vsel %vm898, %v837, %v821
    %v909 = vsel %vm898, %v838, %v822
    %v910 = vsel %vm898, %v839, %v823
    %v911 = vsel %vm898, %v840, %v824
    %v912 = vsel %vm898, %v841, %v825
    %v913 = vsel %vm898, %v842, %v826
    %v914 = vsel %vm898, %v843, %v827
    %931 = vmatprep.subr.mxu0 0.0
    %932 = vmatpush1.xpose.msra.mxu0 0.0
    %933 = vmatprep.subr.mxu0 0.0
    %934 = vmatpush1.xpose.msra.mxu0 0.0
    %935 = vmatprep.subr.mxu0 0.0
    %936 = vmatpush1.xpose.msra.mxu0 0.0
    %937 = vmatprep.subr.mxu0 0.0
    %938 = vmatpush1.xpose.msra.mxu0 0.0
    %939 = vmatprep.subr.mxu0 0.0
    %940 = vmatpush1.xpose.msra.mxu0 0.0
    %941 = vmatprep.subr.mxu0 0.0
    %942 = vmatpush1.xpose.msra.mxu0 0.0
    %943 = vmatprep.subr.mxu0 0.0
    %944 = vmatpush1.xpose.msra.mxu0 0.0
    %945 = vmatprep.subr.mxu0 0.0
    %946 = vmatpush1.xpose.msra.mxu0 0.0
    %947 = vmatprep.subr.mxu0 0.0
    %948 = vmatpush1.xpose.msra.mxu0 0.0
    %949 = vmatprep.subr.mxu0 0.0
    %950 = vmatpush1.xpose.msra.mxu0 0.0
    %951 = vmatprep.subr.mxu0 0.0
    %952 = vmatpush1.xpose.msra.mxu0 0.0
    %953 = vmatprep.subr.mxu0 0.0
    %954 = vmatpush1.xpose.msra.mxu0 0.0
    %955 = vmatprep.subr.mxu0 0.0
    %956 = vmatpush1.xpose.msra.mxu0 0.0
    %957 = vmatprep.subr.mxu0 0.0
    %958 = vmatpush1.xpose.msra.mxu0 0.0
    %959 = vmatprep.subr.mxu0 0.0
    %960 = vmatpush1.xpose.msra.mxu0 0.0
    %961 = vmatprep.subr.mxu0 %v851
    %962 = vmatpush1.xpose.msra.mxu0 %v850
    %963 = vmatprep.subr.mxu0 0.0
    %964 = vmatpush2.xpose.msra.mxu0 0.0
    %965 = vmatprep.subr.mxu0 0.0
    %966 = vmatpush2.xpose.msra.mxu0 0.0
    %967 = vmatprep.subr.mxu0 0.0
    %968 = vmatpush2.xpose.msra.mxu0 0.0
    %969 = vmatprep.subr.mxu0 0.0
    %970 = vmatpush2.xpose.msra.mxu0 0.0
    %971 = vmatprep.subr.mxu0 0.0
    %972 = vmatpush2.xpose.msra.mxu0 0.0
    %973 = vmatprep.subr.mxu0 0.0
    %974 = vmatpush2.xpose.msra.mxu0 0.0
    %975 = vmatprep.subr.mxu0 0.0
    %976 = vmatpush2.xpose.msra.mxu0 0.0
    %977 = vmatprep.subr.mxu0 0.0
    %978 = vmatpush2.xpose.msra.mxu0 0.0
    %979 = vmatprep.subr.mxu0 0.0
    %980 = vmatpush2.xpose.msra.mxu0 0.0
    %981 = vmatprep.subr.mxu0 0.0
    %982 = vmatpush2.xpose.msra.mxu0 0.0
    %983 = vmatprep.subr.mxu0 0.0
    %984 = vmatpush2.xpose.msra.mxu0 0.0
    %985 = vmatprep.subr.mxu0 0.0
    %986 = vmatpush2.xpose.msra.mxu0 0.0
    %987 = vmatprep.subr.mxu0 0.0
    %988 = vmatpush2.xpose.msra.mxu0 0.0
    %989 = vmatprep.subr.mxu0 0.0
    %990 = vmatpush2.xpose.msra.mxu0 0.0
    %991 = vmatprep.subr.mxu0 0.0
    %992 = vmatpush2.xpose.msra.mxu0 0.0
    %993 = vmatprep.subr.mxu0 0.0
    %994 = vmatpush2.xpose.msra.mxu0 0.0
    %995 = vmatprep.mubr.f32.mxu0 %v900
    %996 = vmatmul.mubr.f32.gmra.mxu0 %v899
    %v997 = vpop.f32.mrf.mxu0
    %v998 = vadd.f32 0.0, %v997
    %v999 = vpop.f32.mrf.mxu0
    %1000 = vdwg.mxu0
    %1001 = vmatprep.subr.mxu0 0.0
    %1002 = vmatpush1.xpose.msra.mxu0 0.0
    %1003 = vmatprep.subr.mxu0 0.0
    %1004 = vmatpush1.xpose.msra.mxu0 0.0
    %1005 = vmatprep.subr.mxu0 0.0
    %1006 = vmatpush1.xpose.msra.mxu0 0.0
    %1007 = vmatprep.subr.mxu0 0.0
    %1008 = vmatpush1.xpose.msra.mxu0 0.0
    %1009 = vmatprep.subr.mxu0 0.0
    %1010 = vmatpush1.xpose.msra.mxu0 0.0
    %1011 = vmatprep.subr.mxu0 0.0
    %1012 = vmatpush1.xpose.msra.mxu0 0.0
    %1013 = vmatprep.subr.mxu0 0.0
    %1014 = vmatpush1.xpose.msra.mxu0 0.0
    %1015 = vmatprep.subr.mxu0 0.0
    %1016 = vmatpush1.xpose.msra.mxu0 0.0
    %1017 = vmatprep.subr.mxu0 0.0
    %1018 = vmatpush1.xpose.msra.mxu0 0.0
    %1019 = vmatprep.subr.mxu0 0.0
    %1020 = vmatpush1.xpose.msra.mxu0 0.0
    %1021 = vmatprep.subr.mxu0 0.0
    %1022 = vmatpush1.xpose.msra.mxu0 0.0
    %1023 = vmatprep.subr.mxu0 0.0
    %1024 = vmatpush1.xpose.msra.mxu0 0.0
    %1025 = vmatprep.subr.mxu0 0.0
    %1026 = vmatpush1.xpose.msra.mxu0 0.0
    %1027 = vmatprep.subr.mxu0 0.0
    %1028 = vmatpush1.xpose.msra.mxu0 0.0
    %1029 = vmatprep.subr.mxu0 0.0
    %1030 = vmatpush1.xpose.msra.mxu0 0.0
    %1031 = vmatprep.subr.mxu0 %v853
    %1032 = vmatpush1.xpose.msra.mxu0 %v852
    %1033 = vmatprep.subr.mxu0 0.0
    %1034 = vmatpush2.xpose.msra.mxu0 0.0
    %1035 = vmatprep.subr.mxu0 0.0
    %1036 = vmatpush2.xpose.msra.mxu0 0.0
    %1037 = vmatprep.subr.mxu0 0.0
    %1038 = vmatpush2.xpose.msra.mxu0 0.0
    %1039 = vmatprep.subr.mxu0 0.0
    %1040 = vmatpush2.xpose.msra.mxu0 0.0
    %1041 = vmatprep.subr.mxu0 0.0
    %1042 = vmatpush2.xpose.msra.mxu0 0.0
    %1043 = vmatprep.subr.mxu0 0.0
    %1044 = vmatpush2.xpose.msra.mxu0 0.0
    %1045 = vmatprep.subr.mxu0 0.0
    %1046 = vmatpush2.xpose.msra.mxu0 0.0
    %1047 = vmatprep.subr.mxu0 0.0
    %1048 = vmatpush2.xpose.msra.mxu0 0.0
    %1049 = vmatprep.subr.mxu0 0.0
    %1050 = vmatpush2.xpose.msra.mxu0 0.0
    %1051 = vmatprep.subr.mxu0 0.0
    %1052 = vmatpush2.xpose.msra.mxu0 0.0
    %1053 = vmatprep.subr.mxu0 0.0
    %1054 = vmatpush2.xpose.msra.mxu0 0.0
    %1055 = vmatprep.subr.mxu0 0.0
    %1056 = vmatpush2.xpose.msra.mxu0 0.0
    %1057 = vmatprep.subr.mxu0 0.0
    %1058 = vmatpush2.xpose.msra.mxu0 0.0
    %1059 = vmatprep.subr.mxu0 0.0
    %1060 = vmatpush2.xpose.msra.mxu0 0.0
    %1061 = vmatprep.subr.mxu0 0.0
    %1062 = vmatpush2.xpose.msra.mxu0 0.0
    %1063 = vmatprep.subr.mxu0 0.0
    %1064 = vmatpush2.xpose.msra.mxu0 0.0
    %1065 = vmatprep.mubr.f32.mxu0 %v902
    %1066 = vmatmul.mubr.f32.gmra.mxu0 %v901
    %v1067 = vpop.f32.mrf.mxu0
    %v1068 = vadd.f32 %v998, %v1067
    %v1069 = vpop.f32.mrf.mxu0
    %1070 = vdwg.mxu0
    %1071 = vmatprep.subr.mxu0 0.0
    %1072 = vmatpush1.xpose.msra.mxu0 0.0
    %1073 = vmatprep.subr.mxu0 0.0
    %1074 = vmatpush1.xpose.msra.mxu0 0.0
    %1075 = vmatprep.subr.mxu0 0.0
    %1076 = vmatpush1.xpose.msra.mxu0 0.0
    %1077 = vmatprep.subr.mxu0 0.0
    %1078 = vmatpush1.xpose.msra.mxu0 0.0
    %1079 = vmatprep.subr.mxu0 0.0
    %1080 = vmatpush1.xpose.msra.mxu0 0.0
    %1081 = vmatprep.subr.mxu0 0.0
    %1082 = vmatpush1.xpose.msra.mxu0 0.0
    %1083 = vmatprep.subr.mxu0 0.0
    %1084 = vmatpush1.xpose.msra.mxu0 0.0
    %1085 = vmatprep.subr.mxu0 0.0
    %1086 = vmatpush1.xpose.msra.mxu0 0.0
    %1087 = vmatprep.subr.mxu0 0.0
    %1088 = vmatpush1.xpose.msra.mxu0 0.0
    %1089 = vmatprep.subr.mxu0 0.0
    %1090 = vmatpush1.xpose.msra.mxu0 0.0
    %1091 = vmatprep.subr.mxu0 0.0
    %1092 = vmatpush1.xpose.msra.mxu0 0.0
    %1093 = vmatprep.subr.mxu0 0.0
    %1094 = vmatpush1.xpose.msra.mxu0 0.0
    %1095 = vmatprep.subr.mxu0 0.0
    %1096 = vmatpush1.xpose.msra.mxu0 0.0
    %1097 = vmatprep.subr.mxu0 0.0
    %1098 = vmatpush1.xpose.msra.mxu0 0.0
    %1099 = vmatprep.subr.mxu0 0.0
    %1100 = vmatpush1.xpose.msra.mxu0 0.0
    %1101 = vmatprep.subr.mxu0 %v855
    %1102 = vmatpush1.xpose.msra.mxu0 %v854
    %1103 = vmatprep.subr.mxu0 0.0
    %1104 = vmatpush2.xpose.msra.mxu0 0.0
    %1105 = vmatprep.subr.mxu0 0.0
    %1106 = vmatpush2.xpose.msra.mxu0 0.0
    %1107 = vmatprep.subr.mxu0 0.0
    %1108 = vmatpush2.xpose.msra.mxu0 0.0
    %1109 = vmatprep.subr.mxu0 0.0
    %1110 = vmatpush2.xpose.msra.mxu0 0.0
    %1111 = vmatprep.subr.mxu0 0.0
    %1112 = vmatpush2.xpose.msra.mxu0 0.0
    %1113 = vmatprep.subr.mxu0 0.0
    %1114 = vmatpush2.xpose.msra.mxu0 0.0
    %1115 = vmatprep.subr.mxu0 0.0
    %1116 = vmatpush2.xpose.msra.mxu0 0.0
    %1117 = vmatprep.subr.mxu0 0.0
    %1118 = vmatpush2.xpose.msra.mxu0 0.0
    %1119 = vmatprep.subr.mxu0 0.0
    %1120 = vmatpush2.xpose.msra.mxu0 0.0
    %1121 = vmatprep.subr.mxu0 0.0
    %1122 = vmatpush2.xpose.msra.mxu0 0.0
    %1123 = vmatprep.subr.mxu0 0.0
    %1124 = vmatpush2.xpose.msra.mxu0 0.0
    %1125 = vmatprep.subr.mxu0 0.0
    %1126 = vmatpush2.xpose.msra.mxu0 0.0
    %1127 = vmatprep.subr.mxu0 0.0
    %1128 = vmatpush2.xpose.msra.mxu0 0.0
    %1129 = vmatprep.subr.mxu0 0.0
    %1130 = vmatpush2.xpose.msra.mxu0 0.0
    %1131 = vmatprep.subr.mxu0 0.0
    %1132 = vmatpush2.xpose.msra.mxu0 0.0
    %1133 = vmatprep.subr.mxu0 0.0
    %1134 = vmatpush2.xpose.msra.mxu0 0.0
    %1135 = vmatprep.mubr.f32.mxu0 %v904
    %1136 = vmatmul.mubr.f32.gmra.mxu0 %v903
    %v1137 = vpop.f32.mrf.mxu0
    %v1138 = vadd.f32 %v1068, %v1137
    %v1139 = vpop.f32.mrf.mxu0
    %1140 = vdwg.mxu0
    %1141 = vmatprep.subr.mxu0 0.0
    %1142 = vmatpush1.xpose.msra.mxu0 0.0
    %1143 = vmatprep.subr.mxu0 0.0
    %1144 = vmatpush1.xpose.msra.mxu0 0.0
    %1145 = vmatprep.subr.mxu0 0.0
    %1146 = vmatpush1.xpose.msra.mxu0 0.0
    %1147 = vmatprep.subr.mxu0 0.0
    %1148 = vmatpush1.xpose.msra.mxu0 0.0
    %1149 = vmatprep.subr.mxu0 0.0
    %1150 = vmatpush1.xpose.msra.mxu0 0.0
    %1151 = vmatprep.subr.mxu0 0.0
    %1152 = vmatpush1.xpose.msra.mxu0 0.0
    %1153 = vmatprep.subr.mxu0 0.0
    %1154 = vmatpush1.xpose.msra.mxu0 0.0
    %1155 = vmatprep.subr.mxu0 0.0
    %1156 = vmatpush1.xpose.msra.mxu0 0.0
    %1157 = vmatprep.subr.mxu0 0.0
    %1158 = vmatpush1.xpose.msra.mxu0 0.0
    %1159 = vmatprep.subr.mxu0 0.0
    %1160 = vmatpush1.xpose.msra.mxu0 0.0
    %1161 = vmatprep.subr.mxu0 0.0
    %1162 = vmatpush1.xpose.msra.mxu0 0.0
    %1163 = vmatprep.subr.mxu0 0.0
    %1164 = vmatpush1.xpose.msra.mxu0 0.0
    %1165 = vmatprep.subr.mxu0 0.0
    %1166 = vmatpush1.xpose.msra.mxu0 0.0
    %1167 = vmatprep.subr.mxu0 0.0
    %1168 = vmatpush1.xpose.msra.mxu0 0.0
    %1169 = vmatprep.subr.mxu0 0.0
    %1170 = vmatpush1.xpose.msra.mxu0 0.0
    %1171 = vmatprep.subr.mxu0 %v857
    %1172 = vmatpush1.xpose.msra.mxu0 %v856
    %1173 = vmatprep.subr.mxu0 0.0
    %1174 = vmatpush2.xpose.msra.mxu0 0.0
    %1175 = vmatprep.subr.mxu0 0.0
    %1176 = vmatpush2.xpose.msra.mxu0 0.0
    %1177 = vmatprep.subr.mxu0 0.0
    %1178 = vmatpush2.xpose.msra.mxu0 0.0
    %1179 = vmatprep.subr.mxu0 0.0
    %1180 = vmatpush2.xpose.msra.mxu0 0.0
    %1181 = vmatprep.subr.mxu0 0.0
    %1182 = vmatpush2.xpose.msra.mxu0 0.0
    %1183 = vmatprep.subr.mxu0 0.0
    %1184 = vmatpush2.xpose.msra.mxu0 0.0
    %1185 = vmatprep.subr.mxu0 0.0
    %1186 = vmatpush2.xpose.msra.mxu0 0.0
    %1187 = vmatprep.subr.mxu0 0.0
    %1188 = vmatpush2.xpose.msra.mxu0 0.0
    %1189 = vmatprep.subr.mxu0 0.0
    %1190 = vmatpush2.xpose.msra.mxu0 0.0
    %1191 = vmatprep.subr.mxu0 0.0
    %1192 = vmatpush2.xpose.msra.mxu0 0.0
    %1193 = vmatprep.subr.mxu0 0.0
    %1194 = vmatpush2.xpose.msra.mxu0 0.0
    %1195 = vmatprep.subr.mxu0 0.0
    %1196 = vmatpush2.xpose.msra.mxu0 0.0
    %1197 = vmatprep.subr.mxu0 0.0
    %1198 = vmatpush2.xpose.msra.mxu0 0.0
    %1199 = vmatprep.subr.mxu0 0.0
    %1200 = vmatpush2.xpose.msra.mxu0 0.0
    %1201 = vmatprep.subr.mxu0 0.0
    %1202 = vmatpush2.xpose.msra.mxu0 0.0
    %1203 = vmatprep.subr.mxu0 0.0
    %1204 = vmatpush2.xpose.msra.mxu0 0.0
    %1205 = vmatprep.mubr.f32.mxu0 %v906
    %1206 = vmatmul.mubr.f32.gmra.mxu0 %v905
    %v1207 = vpop.f32.mrf.mxu0
    %v1208 = vadd.f32 %v1138, %v1207
    %v1209 = vpop.f32.mrf.mxu0
    %1210 = vdwg.mxu0
    %1211 = vmatprep.subr.mxu0 0.0
    %1212 = vmatpush1.xpose.msra.mxu0 0.0
    %1213 = vmatprep.subr.mxu0 0.0
    %1214 = vmatpush1.xpose.msra.mxu0 0.0
    %1215 = vmatprep.subr.mxu0 0.0
    %1216 = vmatpush1.xpose.msra.mxu0 0.0
    %1217 = vmatprep.subr.mxu0 0.0
    %1218 = vmatpush1.xpose.msra.mxu0 0.0
    %1219 = vmatprep.subr.mxu0 0.0
    %1220 = vmatpush1.xpose.msra.mxu0 0.0
    %1221 = vmatprep.subr.mxu0 0.0
    %1222 = vmatpush1.xpose.msra.mxu0 0.0
    %1223 = vmatprep.subr.mxu0 0.0
    %1224 = vmatpush1.xpose.msra.mxu0 0.0
    %1225 = vmatprep.subr.mxu0 0.0
    %1226 = vmatpush1.xpose.msra.mxu0 0.0
    %1227 = vmatprep.subr.mxu0 0.0
    %1228 = vmatpush1.xpose.msra.mxu0 0.0
    %1229 = vmatprep.subr.mxu0 0.0
    %1230 = vmatpush1.xpose.msra.mxu0 0.0
    %1231 = vmatprep.subr.mxu0 0.0
    %1232 = vmatpush1.xpose.msra.mxu0 0.0
    %1233 = vmatprep.subr.mxu0 0.0
    %1234 = vmatpush1.xpose.msra.mxu0 0.0
    %1235 = vmatprep.subr.mxu0 0.0
    %1236 = vmatpush1.xpose.msra.mxu0 0.0
    %1237 = vmatprep.subr.mxu0 0.0
    %1238 = vmatpush1.xpose.msra.mxu0 0.0
    %1239 = vmatprep.subr.mxu0 0.0
    %1240 = vmatpush1.xpose.msra.mxu0 0.0
    %1241 = vmatprep.subr.mxu0 %v859
    %1242 = vmatpush1.xpose.msra.mxu0 %v858
    %1243 = vmatprep.subr.mxu0 0.0
    %1244 = vmatpush2.xpose.msra.mxu0 0.0
    %1245 = vmatprep.subr.mxu0 0.0
    %1246 = vmatpush2.xpose.msra.mxu0 0.0
    %1247 = vmatprep.subr.mxu0 0.0
    %1248 = vmatpush2.xpose.msra.mxu0 0.0
    %1249 = vmatprep.subr.mxu0 0.0
    %1250 = vmatpush2.xpose.msra.mxu0 0.0
    %1251 = vmatprep.subr.mxu0 0.0
    %1252 = vmatpush2.xpose.msra.mxu0 0.0
    %1253 = vmatprep.subr.mxu0 0.0
    %1254 = vmatpush2.xpose.msra.mxu0 0.0
    %1255 = vmatprep.subr.mxu0 0.0
    %1256 = vmatpush2.xpose.msra.mxu0 0.0
    %1257 = vmatprep.subr.mxu0 0.0
    %1258 = vmatpush2.xpose.msra.mxu0 0.0
    %1259 = vmatprep.subr.mxu0 0.0
    %1260 = vmatpush2.xpose.msra.mxu0 0.0
    %1261 = vmatprep.subr.mxu0 0.0
    %1262 = vmatpush2.xpose.msra.mxu0 0.0
    %1263 = vmatprep.subr.mxu0 0.0
    %1264 = vmatpush2.xpose.msra.mxu0 0.0
    %1265 = vmatprep.subr.mxu0 0.0
    %1266 = vmatpush2.xpose.msra.mxu0 0.0
    %1267 = vmatprep.subr.mxu0 0.0
    %1268 = vmatpush2.xpose.msra.mxu0 0.0
    %1269 = vmatprep.subr.mxu0 0.0
    %1270 = vmatpush2.xpose.msra.mxu0 0.0
    %1271 = vmatprep.subr.mxu0 0.0
    %1272 = vmatpush2.xpose.msra.mxu0 0.0
    %1273 = vmatprep.subr.mxu0 0.0
    %1274 = vmatpush2.xpose.msra.mxu0 0.0
    %1275 = vmatprep.mubr.f32.mxu0 %v908
    %1276 = vmatmul.mubr.f32.gmra.mxu0 %v907
    %v1277 = vpop.f32.mrf.mxu0
    %v1278 = vadd.f32 %v1208, %v1277
    %v1279 = vpop.f32.mrf.mxu0
    %1280 = vdwg.mxu0
    %1281 = vmatprep.subr.mxu0 0.0
    %1282 = vmatpush1.xpose.msra.mxu0 0.0
    %1283 = vmatprep.subr.mxu0 0.0
    %1284 = vmatpush1.xpose.msra.mxu0 0.0
    %1285 = vmatprep.subr.mxu0 0.0
    %1286 = vmatpush1.xpose.msra.mxu0 0.0
    %1287 = vmatprep.subr.mxu0 0.0
    %1288 = vmatpush1.xpose.msra.mxu0 0.0
    %1289 = vmatprep.subr.mxu0 0.0
    %1290 = vmatpush1.xpose.msra.mxu0 0.0
    %1291 = vmatprep.subr.mxu0 0.0
    %1292 = vmatpush1.xpose.msra.mxu0 0.0
    %1293 = vmatprep.subr.mxu0 0.0
    %1294 = vmatpush1.xpose.msra.mxu0 0.0
    %1295 = vmatprep.subr.mxu0 0.0
    %1296 = vmatpush1.xpose.msra.mxu0 0.0
    %1297 = vmatprep.subr.mxu0 0.0
    %1298 = vmatpush1.xpose.msra.mxu0 0.0
    %1299 = vmatprep.subr.mxu0 0.0
    %1300 = vmatpush1.xpose.msra.mxu0 0.0
    %1301 = vmatprep.subr.mxu0 0.0
    %1302 = vmatpush1.xpose.msra.mxu0 0.0
    %1303 = vmatprep.subr.mxu0 0.0
    %1304 = vmatpush1.xpose.msra.mxu0 0.0
    %1305 = vmatprep.subr.mxu0 0.0
    %1306 = vmatpush1.xpose.msra.mxu0 0.0
    %1307 = vmatprep.subr.mxu0 0.0
    %1308 = vmatpush1.xpose.msra.mxu0 0.0
    %1309 = vmatprep.subr.mxu0 0.0
    %1310 = vmatpush1.xpose.msra.mxu0 0.0
    %1311 = vmatprep.subr.mxu0 %v861
    %1312 = vmatpush1.xpose.msra.mxu0 %v860
    %1313 = vmatprep.subr.mxu0 0.0
    %1314 = vmatpush2.xpose.msra.mxu0 0.0
    %1315 = vmatprep.subr.mxu0 0.0
    %1316 = vmatpush2.xpose.msra.mxu0 0.0
    %1317 = vmatprep.subr.mxu0 0.0
    %1318 = vmatpush2.xpose.msra.mxu0 0.0
    %1319 = vmatprep.subr.mxu0 0.0
    %1320 = vmatpush2.xpose.msra.mxu0 0.0
    %1321 = vmatprep.subr.mxu0 0.0
    %1322 = vmatpush2.xpose.msra.mxu0 0.0
    %1323 = vmatprep.subr.mxu0 0.0
    %1324 = vmatpush2.xpose.msra.mxu0 0.0
    %1325 = vmatprep.subr.mxu0 0.0
    %1326 = vmatpush2.xpose.msra.mxu0 0.0
    %1327 = vmatprep.subr.mxu0 0.0
    %1328 = vmatpush2.xpose.msra.mxu0 0.0
    %1329 = vmatprep.subr.mxu0 0.0
    %1330 = vmatpush2.xpose.msra.mxu0 0.0
    %1331 = vmatprep.subr.mxu0 0.0
    %1332 = vmatpush2.xpose.msra.mxu0 0.0
    %1333 = vmatprep.subr.mxu0 0.0
    %1334 = vmatpush2.xpose.msra.mxu0 0.0
    %1335 = vmatprep.subr.mxu0 0.0
    %1336 = vmatpush2.xpose.msra.mxu0 0.0
    %1337 = vmatprep.subr.mxu0 0.0
    %1338 = vmatpush2.xpose.msra.mxu0 0.0
    %1339 = vmatprep.subr.mxu0 0.0
    %1340 = vmatpush2.xpose.msra.mxu0 0.0
    %1341 = vmatprep.subr.mxu0 0.0
    %1342 = vmatpush2.xpose.msra.mxu0 0.0
    %1343 = vmatprep.subr.mxu0 0.0
    %1344 = vmatpush2.xpose.msra.mxu0 0.0
    %1345 = vmatprep.mubr.f32.mxu0 %v910
    %1346 = vmatmul.mubr.f32.gmra.mxu0 %v909
    %v1347 = vpop.f32.mrf.mxu0
    %v1348 = vadd.f32 %v1278, %v1347
    %v1349 = vpop.f32.mrf.mxu0
    %1350 = vdwg.mxu0
    %1351 = vmatprep.subr.mxu0 0.0
    %1352 = vmatpush1.xpose.msra.mxu0 0.0
    %1353 = vmatprep.subr.mxu0 0.0
    %1354 = vmatpush1.xpose.msra.mxu0 0.0
    %1355 = vmatprep.subr.mxu0 0.0
    %1356 = vmatpush1.xpose.msra.mxu0 0.0
    %1357 = vmatprep.subr.mxu0 0.0
    %1358 = vmatpush1.xpose.msra.mxu0 0.0
    %1359 = vmatprep.subr.mxu0 0.0
    %1360 = vmatpush1.xpose.msra.mxu0 0.0
    %1361 = vmatprep.subr.mxu0 0.0
    %1362 = vmatpush1.xpose.msra.mxu0 0.0
    %1363 = vmatprep.subr.mxu0 0.0
    %1364 = vmatpush1.xpose.msra.mxu0 0.0
    %1365 = vmatprep.subr.mxu0 0.0
    %1366 = vmatpush1.xpose.msra.mxu0 0.0
    %1367 = vmatprep.subr.mxu0 0.0
    %1368 = vmatpush1.xpose.msra.mxu0 0.0
    %1369 = vmatprep.subr.mxu0 0.0
    %1370 = vmatpush1.xpose.msra.mxu0 0.0
    %1371 = vmatprep.subr.mxu0 0.0
    %1372 = vmatpush1.xpose.msra.mxu0 0.0
    %1373 = vmatprep.subr.mxu0 0.0
    %1374 = vmatpush1.xpose.msra.mxu0 0.0
    %1375 = vmatprep.subr.mxu0 0.0
    %1376 = vmatpush1.xpose.msra.mxu0 0.0
    %1377 = vmatprep.subr.mxu0 0.0
    %1378 = vmatpush1.xpose.msra.mxu0 0.0
    %1379 = vmatprep.subr.mxu0 0.0
    %1380 = vmatpush1.xpose.msra.mxu0 0.0
    %1381 = vmatprep.subr.mxu0 %v863
    %1382 = vmatpush1.xpose.msra.mxu0 %v862
    %1383 = vmatprep.subr.mxu0 0.0
    %1384 = vmatpush2.xpose.msra.mxu0 0.0
    %1385 = vmatprep.subr.mxu0 0.0
    %1386 = vmatpush2.xpose.msra.mxu0 0.0
    %1387 = vmatprep.subr.mxu0 0.0
    %1388 = vmatpush2.xpose.msra.mxu0 0.0
    %1389 = vmatprep.subr.mxu0 0.0
    %1390 = vmatpush2.xpose.msra.mxu0 0.0
    %1391 = vmatprep.subr.mxu0 0.0
    %1392 = vmatpush2.xpose.msra.mxu0 0.0
    %1393 = vmatprep.subr.mxu0 0.0
    %1394 = vmatpush2.xpose.msra.mxu0 0.0
    %1395 = vmatprep.subr.mxu0 0.0
    %1396 = vmatpush2.xpose.msra.mxu0 0.0
    %1397 = vmatprep.subr.mxu0 0.0
    %1398 = vmatpush2.xpose.msra.mxu0 0.0
    %1399 = vmatprep.subr.mxu0 0.0
    %1400 = vmatpush2.xpose.msra.mxu0 0.0
    %1401 = vmatprep.subr.mxu0 0.0
    %1402 = vmatpush2.xpose.msra.mxu0 0.0
    %1403 = vmatprep.subr.mxu0 0.0
    %1404 = vmatpush2.xpose.msra.mxu0 0.0
    %1405 = vmatprep.subr.mxu0 0.0
    %1406 = vmatpush2.xpose.msra.mxu0 0.0
    %1407 = vmatprep.subr.mxu0 0.0
    %1408 = vmatpush2.xpose.msra.mxu0 0.0
    %1409 = vmatprep.subr.mxu0 0.0
    %1410 = vmatpush2.xpose.msra.mxu0 0.0
    %1411 = vmatprep.subr.mxu0 0.0
    %1412 = vmatpush2.xpose.msra.mxu0 0.0
    %1413 = vmatprep.subr.mxu0 0.0
    %1414 = vmatpush2.xpose.msra.mxu0 0.0
    %1415 = vmatprep.mubr.f32.mxu0 %v912
    %1416 = vmatmul.mubr.f32.gmra.mxu0 %v911
    %v1417 = vpop.f32.mrf.mxu0
    %v1418 = vadd.f32 %v1348, %v1417
    %v1419 = vpop.f32.mrf.mxu0
    %1420 = vdwg.mxu0
    %1421 = vmatprep.subr.mxu0 0.0
    %1422 = vmatpush1.xpose.msra.mxu0 0.0
    %1423 = vmatprep.subr.mxu0 0.0
    %1424 = vmatpush1.xpose.msra.mxu0 0.0
    %1425 = vmatprep.subr.mxu0 0.0
    %1426 = vmatpush1.xpose.msra.mxu0 0.0
    %1427 = vmatprep.subr.mxu0 0.0
    %1428 = vmatpush1.xpose.msra.mxu0 0.0
    %1429 = vmatprep.subr.mxu0 0.0
    %1430 = vmatpush1.xpose.msra.mxu0 0.0
    %1431 = vmatprep.subr.mxu0 0.0
    %1432 = vmatpush1.xpose.msra.mxu0 0.0
    %1433 = vmatprep.subr.mxu0 0.0
    %1434 = vmatpush1.xpose.msra.mxu0 0.0
    %1435 = vmatprep.subr.mxu0 0.0
    %1436 = vmatpush1.xpose.msra.mxu0 0.0
    %1437 = vmatprep.subr.mxu0 0.0
    %1438 = vmatpush1.xpose.msra.mxu0 0.0
    %1439 = vmatprep.subr.mxu0 0.0
    %1440 = vmatpush1.xpose.msra.mxu0 0.0
    %1441 = vmatprep.subr.mxu0 0.0
    %1442 = vmatpush1.xpose.msra.mxu0 0.0
    %1443 = vmatprep.subr.mxu0 0.0
    %1444 = vmatpush1.xpose.msra.mxu0 0.0
    %1445 = vmatprep.subr.mxu0 0.0
    %1446 = vmatpush1.xpose.msra.mxu0 0.0
    %1447 = vmatprep.subr.mxu0 0.0
    %1448 = vmatpush1.xpose.msra.mxu0 0.0
    %1449 = vmatprep.subr.mxu0 0.0
    %1450 = vmatpush1.xpose.msra.mxu0 0.0
    %1451 = vmatprep.subr.mxu0 %v865
    %1452 = vmatpush1.xpose.msra.mxu0 %v864
    %1453 = vmatprep.subr.mxu0 0.0
    %1454 = vmatpush2.xpose.msra.mxu0 0.0
    %1455 = vmatprep.subr.mxu0 0.0
    %1456 = vmatpush2.xpose.msra.mxu0 0.0
    %1457 = vmatprep.subr.mxu0 0.0
    %1458 = vmatpush2.xpose.msra.mxu0 0.0
    %1459 = vmatprep.subr.mxu0 0.0
    %1460 = vmatpush2.xpose.msra.mxu0 0.0
    %1461 = vmatprep.subr.mxu0 0.0
    %1462 = vmatpush2.xpose.msra.mxu0 0.0
    %1463 = vmatprep.subr.mxu0 0.0
    %1464 = vmatpush2.xpose.msra.mxu0 0.0
    %1465 = vmatprep.subr.mxu0 0.0
    %1466 = vmatpush2.xpose.msra.mxu0 0.0
    %1467 = vmatprep.subr.mxu0 0.0
    %1468 = vmatpush2.xpose.msra.mxu0 0.0
    %1469 = vmatprep.subr.mxu0 0.0
    %1470 = vmatpush2.xpose.msra.mxu0 0.0
    %1471 = vmatprep.subr.mxu0 0.0
    %1472 = vmatpush2.xpose.msra.mxu0 0.0
    %1473 = vmatprep.subr.mxu0 0.0
    %1474 = vmatpush2.xpose.msra.mxu0 0.0
    %1475 = vmatprep.subr.mxu0 0.0
    %1476 = vmatpush2.xpose.msra.mxu0 0.0
    %1477 = vmatprep.subr.mxu0 0.0
    %1478 = vmatpush2.xpose.msra.mxu0 0.0
    %1479 = vmatprep.subr.mxu0 0.0
    %1480 = vmatpush2.xpose.msra.mxu0 0.0
    %1481 = vmatprep.subr.mxu0 0.0
    %1482 = vmatpush2.xpose.msra.mxu0 0.0
    %1483 = vmatprep.subr.mxu0 0.0
    %1484 = vmatpush2.xpose.msra.mxu0 0.0
    %1485 = vmatprep.mubr.f32.mxu0 %v914
    %1486 = vmatmul.mubr.f32.gmra.mxu0 %v913
    %v1487 = vpop.f32.mrf.mxu0
    %v1488 = vadd.f32 %v1418, %v1487
    %v1489 = vpop.f32.mrf.mxu0
    %1490 = vdwg.mxu0
    %v1493 = vcombine.high %v810, %v810
    %v1495 = vunpack.c.l.s4 1983009808
    %v1496 = vunpack.c.0.s8 %v1495
    %v1497 = vlaneseq
    %v1498 = vshrl.u32 %v1497, 7
    %v1499 = vsub.s32 %v1496, %v1498
    %v1500 = vrot.slane %v810, %v1499
    %v1502 = vunpack.c.l.s4 1983009808
    %v1503 = vunpack.c.0.s8 %v1502
    %v1504 = vlaneseq
    %v1505 = vshrl.u32 %v1504, 7
    %v1506 = vsub.s32 %v1503, %v1505
    %v1507 = vrot.slane %v1493, %v1506
    %v1508 = vcombine.high %v1500, %v1500
    %v1509 = vcombine.high %v1507, %v1507
    %v1511 = vunpack.c.l.s4 1983009808
    %v1512 = vunpack.c.0.s8 %v1511
    %v1513 = vlaneseq
    %v1514 = vshrl.u32 %v1513, 7
    %v1515 = vsub.s32 %v1512, %v1514
    %v1516 = vrot.slane %v811, %v1515
    %v1517 = vcombine.high %v1516, %v1516
    %1524 = vmatprep.subr.mxu0 0.0
    %1525 = vmatpush1.xpose.msra.mxu0 0.0
    %1526 = vmatprep.subr.mxu0 0.0
    %1527 = vmatpush1.xpose.msra.mxu0 0.0
    %1528 = vmatprep.subr.mxu0 0.0
    %1529 = vmatpush1.xpose.msra.mxu0 0.0
    %1530 = vmatprep.subr.mxu0 0.0
    %1531 = vmatpush1.xpose.msra.mxu0 0.0
    %1532 = vmatprep.subr.mxu0 0.0
    %1533 = vmatpush1.xpose.msra.mxu0 0.0
    %1534 = vmatprep.subr.mxu0 0.0
    %1535 = vmatpush1.xpose.msra.mxu0 0.0
    %1536 = vmatprep.subr.mxu0 0.0
    %1537 = vmatpush1.xpose.msra.mxu0 0.0
    %1538 = vmatprep.subr.mxu0 0.0
    %1539 = vmatpush1.xpose.msra.mxu0 0.0
    %1540 = vmatprep.subr.mxu0 0.0
    %1541 = vmatpush1.xpose.msra.mxu0 0.0
    %1542 = vmatprep.subr.mxu0 0.0
    %1543 = vmatpush1.xpose.msra.mxu0 0.0
    %1544 = vmatprep.subr.mxu0 0.0
    %1545 = vmatpush1.xpose.msra.mxu0 0.0
    %1546 = vmatprep.subr.mxu0 0.0
    %1547 = vmatpush1.xpose.msra.mxu0 0.0
    %1548 = vmatprep.subr.mxu0 0.0
    %1549 = vmatpush1.xpose.msra.mxu0 0.0
    %1550 = vmatprep.subr.mxu0 0.0
    %1551 = vmatpush1.xpose.msra.mxu0 0.0
    %1552 = vmatprep.subr.mxu0 0.0
    %1553 = vmatpush1.xpose.msra.mxu0 0.0
    %1554 = vmatprep.subr.mxu0 %v845
    %1555 = vmatpush1.xpose.msra.mxu0 %v844
    %1556 = vmatprep.subr.mxu0 0.0
    %1557 = vmatpush2.xpose.msra.mxu0 0.0
    %1558 = vmatprep.subr.mxu0 0.0
    %1559 = vmatpush2.xpose.msra.mxu0 0.0
    %1560 = vmatprep.subr.mxu0 0.0
    %1561 = vmatpush2.xpose.msra.mxu0 0.0
    %1562 = vmatprep.subr.mxu0 0.0
    %1563 = vmatpush2.xpose.msra.mxu0 0.0
    %1564 = vmatprep.subr.mxu0 0.0
    %1565 = vmatpush2.xpose.msra.mxu0 0.0
    %1566 = vmatprep.subr.mxu0 0.0
    %1567 = vmatpush2.xpose.msra.mxu0 0.0
    %1568 = vmatprep.subr.mxu0 0.0
    %1569 = vmatpush2.xpose.msra.mxu0 0.0
    %1570 = vmatprep.subr.mxu0 0.0
    %1571 = vmatpush2.xpose.msra.mxu0 0.0
    %1572 = vmatprep.subr.mxu0 0.0
    %1573 = vmatpush2.xpose.msra.mxu0 0.0
    %1574 = vmatprep.subr.mxu0 0.0
    %1575 = vmatpush2.xpose.msra.mxu0 0.0
    %1576 = vmatprep.subr.mxu0 0.0
    %1577 = vmatpush2.xpose.msra.mxu0 0.0
    %1578 = vmatprep.subr.mxu0 0.0
    %1579 = vmatpush2.xpose.msra.mxu0 0.0
    %1580 = vmatprep.subr.mxu0 0.0
    %1581 = vmatpush2.xpose.msra.mxu0 0.0
    %1582 = vmatprep.subr.mxu0 0.0
    %1583 = vmatpush2.xpose.msra.mxu0 0.0
    %1584 = vmatprep.subr.mxu0 0.0
    %1585 = vmatpush2.xpose.msra.mxu0 0.0
    %1586 = vmatprep.subr.mxu0 0.0
    %1587 = vmatpush2.xpose.msra.mxu0 0.0
    %1588 = vmatprep.mubr.f32.mxu0 %v1508
    %1589 = vmatmul.mubr.f32.gmra.mxu0 %v1500
    %v1590 = vpop.f32.mrf.mxu0
    %v1591 = vadd.f32 %v1488, %v1590
    %v1592 = vpop.f32.mrf.mxu0
    %1593 = vdwg.mxu0
    %1594 = vmatprep.subr.mxu0 0.0
    %1595 = vmatpush1.xpose.msra.mxu0 0.0
    %1596 = vmatprep.subr.mxu0 0.0
    %1597 = vmatpush1.xpose.msra.mxu0 0.0
    %1598 = vmatprep.subr.mxu0 0.0
    %1599 = vmatpush1.xpose.msra.mxu0 0.0
    %1600 = vmatprep.subr.mxu0 0.0
    %1601 = vmatpush1.xpose.msra.mxu0 0.0
    %1602 = vmatprep.subr.mxu0 0.0
    %1603 = vmatpush1.xpose.msra.mxu0 0.0
    %1604 = vmatprep.subr.mxu0 0.0
    %1605 = vmatpush1.xpose.msra.mxu0 0.0
    %1606 = vmatprep.subr.mxu0 0.0
    %1607 = vmatpush1.xpose.msra.mxu0 0.0
    %1608 = vmatprep.subr.mxu0 0.0
    %1609 = vmatpush1.xpose.msra.mxu0 0.0
    %1610 = vmatprep.subr.mxu0 0.0
    %1611 = vmatpush1.xpose.msra.mxu0 0.0
    %1612 = vmatprep.subr.mxu0 0.0
    %1613 = vmatpush1.xpose.msra.mxu0 0.0
    %1614 = vmatprep.subr.mxu0 0.0
    %1615 = vmatpush1.xpose.msra.mxu0 0.0
    %1616 = vmatprep.subr.mxu0 0.0
    %1617 = vmatpush1.xpose.msra.mxu0 0.0
    %1618 = vmatprep.subr.mxu0 0.0
    %1619 = vmatpush1.xpose.msra.mxu0 0.0
    %1620 = vmatprep.subr.mxu0 0.0
    %1621 = vmatpush1.xpose.msra.mxu0 0.0
    %1622 = vmatprep.subr.mxu0 0.0
    %1623 = vmatpush1.xpose.msra.mxu0 0.0
    %1624 = vmatprep.subr.mxu0 %v847
    %1625 = vmatpush1.xpose.msra.mxu0 %v846
    %1626 = vmatprep.subr.mxu0 0.0
    %1627 = vmatpush2.xpose.msra.mxu0 0.0
    %1628 = vmatprep.subr.mxu0 0.0
    %1629 = vmatpush2.xpose.msra.mxu0 0.0
    %1630 = vmatprep.subr.mxu0 0.0
    %1631 = vmatpush2.xpose.msra.mxu0 0.0
    %1632 = vmatprep.subr.mxu0 0.0
    %1633 = vmatpush2.xpose.msra.mxu0 0.0
    %1634 = vmatprep.subr.mxu0 0.0
    %1635 = vmatpush2.xpose.msra.mxu0 0.0
    %1636 = vmatprep.subr.mxu0 0.0
    %1637 = vmatpush2.xpose.msra.mxu0 0.0
    %1638 = vmatprep.subr.mxu0 0.0
    %1639 = vmatpush2.xpose.msra.mxu0 0.0
    %1640 = vmatprep.subr.mxu0 0.0
    %1641 = vmatpush2.xpose.msra.mxu0 0.0
    %1642 = vmatprep.subr.mxu0 0.0
    %1643 = vmatpush2.xpose.msra.mxu0 0.0
    %1644 = vmatprep.subr.mxu0 0.0
    %1645 = vmatpush2.xpose.msra.mxu0 0.0
    %1646 = vmatprep.subr.mxu0 0.0
    %1647 = vmatpush2.xpose.msra.mxu0 0.0
    %1648 = vmatprep.subr.mxu0 0.0
    %1649 = vmatpush2.xpose.msra.mxu0 0.0
    %1650 = vmatprep.subr.mxu0 0.0
    %1651 = vmatpush2.xpose.msra.mxu0 0.0
    %1652 = vmatprep.subr.mxu0 0.0
    %1653 = vmatpush2.xpose.msra.mxu0 0.0
    %1654 = vmatprep.subr.mxu0 0.0
    %1655 = vmatpush2.xpose.msra.mxu0 0.0
    %1656 = vmatprep.subr.mxu0 0.0
    %1657 = vmatpush2.xpose.msra.mxu0 0.0
    %1658 = vmatprep.mubr.f32.mxu0 %v1509
    %1659 = vmatmul.mubr.f32.gmra.mxu0 %v1507
    %v1660 = vpop.f32.mrf.mxu0
    %v1661 = vadd.f32 %v1591, %v1660
    %v1662 = vpop.f32.mrf.mxu0
    %1663 = vdwg.mxu0
    %1664 = vmatprep.subr.mxu0 0.0
    %1665 = vmatpush1.xpose.msra.mxu0 0.0
    %1666 = vmatprep.subr.mxu0 0.0
    %1667 = vmatpush1.xpose.msra.mxu0 0.0
    %1668 = vmatprep.subr.mxu0 0.0
    %1669 = vmatpush1.xpose.msra.mxu0 0.0
    %1670 = vmatprep.subr.mxu0 0.0
    %1671 = vmatpush1.xpose.msra.mxu0 0.0
    %1672 = vmatprep.subr.mxu0 0.0
    %1673 = vmatpush1.xpose.msra.mxu0 0.0
    %1674 = vmatprep.subr.mxu0 0.0
    %1675 = vmatpush1.xpose.msra.mxu0 0.0
    %1676 = vmatprep.subr.mxu0 0.0
    %1677 = vmatpush1.xpose.msra.mxu0 0.0
    %1678 = vmatprep.subr.mxu0 0.0
    %1679 = vmatpush1.xpose.msra.mxu0 0.0
    %1680 = vmatprep.subr.mxu0 0.0
    %1681 = vmatpush1.xpose.msra.mxu0 0.0
    %1682 = vmatprep.subr.mxu0 0.0
    %1683 = vmatpush1.xpose.msra.mxu0 0.0
    %1684 = vmatprep.subr.mxu0 0.0
    %1685 = vmatpush1.xpose.msra.mxu0 0.0
    %1686 = vmatprep.subr.mxu0 0.0
    %1687 = vmatpush1.xpose.msra.mxu0 0.0
    %1688 = vmatprep.subr.mxu0 0.0
    %1689 = vmatpush1.xpose.msra.mxu0 0.0
    %1690 = vmatprep.subr.mxu0 0.0
    %1691 = vmatpush1.xpose.msra.mxu0 0.0
    %1692 = vmatprep.subr.mxu0 0.0
    %1693 = vmatpush1.xpose.msra.mxu0 0.0
    %1694 = vmatprep.subr.mxu0 %v849
    %1695 = vmatpush1.xpose.msra.mxu0 %v848
    %1696 = vmatprep.subr.mxu0 0.0
    %1697 = vmatpush2.xpose.msra.mxu0 0.0
    %1698 = vmatprep.subr.mxu0 0.0
    %1699 = vmatpush2.xpose.msra.mxu0 0.0
    %1700 = vmatprep.subr.mxu0 0.0
    %1701 = vmatpush2.xpose.msra.mxu0 0.0
    %1702 = vmatprep.subr.mxu0 0.0
    %1703 = vmatpush2.xpose.msra.mxu0 0.0
    %1704 = vmatprep.subr.mxu0 0.0
    %1705 = vmatpush2.xpose.msra.mxu0 0.0
    %1706 = vmatprep.subr.mxu0 0.0
    %1707 = vmatpush2.xpose.msra.mxu0 0.0
    %1708 = vmatprep.subr.mxu0 0.0
    %1709 = vmatpush2.xpose.msra.mxu0 0.0
    %1710 = vmatprep.subr.mxu0 0.0
    %1711 = vmatpush2.xpose.msra.mxu0 0.0
    %1712 = vmatprep.subr.mxu0 0.0
    %1713 = vmatpush2.xpose.msra.mxu0 0.0
    %1714 = vmatprep.subr.mxu0 0.0
    %1715 = vmatpush2.xpose.msra.mxu0 0.0
    %1716 = vmatprep.subr.mxu0 0.0
    %1717 = vmatpush2.xpose.msra.mxu0 0.0
    %1718 = vmatprep.subr.mxu0 0.0
    %1719 = vmatpush2.xpose.msra.mxu0 0.0
    %1720 = vmatprep.subr.mxu0 0.0
    %1721 = vmatpush2.xpose.msra.mxu0 0.0
    %1722 = vmatprep.subr.mxu0 0.0
    %1723 = vmatpush2.xpose.msra.mxu0 0.0
    %1724 = vmatprep.subr.mxu0 0.0
    %1725 = vmatpush2.xpose.msra.mxu0 0.0
    %1726 = vmatprep.subr.mxu0 0.0
    %1727 = vmatpush2.xpose.msra.mxu0 0.0
    %1728 = vmatprep.mubr.f32.mxu0 %v1517
    %1729 = vmatmul.mubr.f32.gmra.mxu0 %v1516
    %v1730 = vpop.f32.mrf.mxu0
    %v1731 = vadd.f32 %v1661, %v1730
    %v1732 = vpop.f32.mrf.mxu0
    %1733 = vdwg.mxu0
    %v1734 = vld [vmem:[%s4] sm:$0x1]
    %v1736 = vlaneseq
    %v1737 = vshrl.u32 %v1736, 7
    %v1738 = vsub.s32 0, %v1737
    %v1739 = vrot.slane %v1734, %v1738
    %v1741 = vadd.f32 %v1731, %v1739
    %vm1742 = vcmask 58368
    %1743 = vst.msk [vmem:[#allocation2] sm:$0x3] %vm1742, %v1741
    // Predicated region
    $region22: #{tpu_custom_call.1} parent=1 // pred_check
      _
    $region23: #{tpu_custom_call.1} parent=1 // pred_check_branch
      %1745 = sbr.rel (0) target = $region25
    $region24: #{tpu_custom_call.1} parent=1 // pred_region
      %s1747 = ssub.s32 32, 32
      %1748 = vsyncadd [#allocation3], %s1747
      %s1750 = sshll.u32 [#allocation2], 4
      %s1751 = int_to_ptr.vmem [resolvable:$true] %s1750
      %1753 = dma.vmem_to_hbm [thread:$0]  %s1751, 32, %s5, [#allocation3]
    $region25: #{tpu_custom_call.1} parent=1 // pred_fallthru
      _
    // Predicated region
    $region26: #{tpu_custom_call.1} parent=1 // pred_check
      _
    $region27: #{tpu_custom_call.1} parent=1 // pred_check_branch
      %1755 = sbr.rel (0) target = $region29
    $region28: #{tpu_custom_call.1} parent=1 // pred_region
      %1756 = dma.done [#allocation3], 32
    $region29: #{tpu_custom_call.1} parent=1 // pred_fallthru
      _
    %1757 = vsyncpa [#allocation3], 1

</llo_original>
